<compile_context>
chip_gen: v5e
topology: v5e:2x2
jax: 0.10.0
libtpu: 0.0.40
codegen_flags: <defaults>
</compile_context>

<pallas_src>
import functools
import math

import jax
import jax.numpy as jnp
from jax.experimental import pallas as pl
from jax.experimental.pallas import tpu as pltpu


# ----------------------------------------------------------------------------
# Fused CrossAttentionBlock kernel: one (batch, q-tile) per grid step.
# ----------------------------------------------------------------------------
def _xattn_block_kernel(q_ref, x_ref,
                        g1_ref, b1_ref,          # norm1 gamma/beta  (1, C)
                        wq_ref,                   # q proj            (C, C)   bf16
                        wkv_ref,                  # kv proj           (C, 2C)  bf16
                        wp_ref, bp_ref,           # out proj          (C, C) bf16, (1, C)
                        g2_ref, b2_ref,           # norm2 gamma/beta  (1, C)
                        w1_ref, bm1_ref,          # mlp fc1           (C, H) bf16, (1, H)
                        w2_ref, bm2_ref,          # mlp fc2           (H, C) bf16, (1, C)
                        o_ref,
                        k_scr, v_scr,             # cached K / V      (N, C) bf16
                        *, num_heads, ln_eps):
    f32 = jnp.float32
    bf16 = jnp.bfloat16
    C = q_ref.shape[-1]
    hd = C // num_heads
    scale = hd ** -0.5

    def layernorm(z, g, b):
        mu = jnp.mean(z, axis=-1, keepdims=True)
        var = jnp.mean((z - mu) * (z - mu), axis=-1, keepdims=True)
        return (z - mu) * jax.lax.rsqrt(var + ln_eps) * g + b

    # ---- LayerNorm(x) + KV projection: computed once per batch element ------
    # The x block / weight block indices are constant over the q-tile axis, so
    # the (N, C) K and V results are cached in per-core VMEM scratch at q-tile
    # index 0 and reused for every subsequent q tile of this batch element.
    @pl.when(pl.program_id(1) == 0)
    def _():
        xn = layernorm(x_ref[0].astype(f32),
                       g1_ref[...].astype(f32), b1_ref[...].astype(f32))
        kv = jnp.dot(xn.astype(bf16), wkv_ref[...],
                     preferred_element_type=f32)            # (N, 2C) f32 acc
        k_scr[...] = kv[:, :C].astype(bf16)
        v_scr[...] = kv[:, C:].astype(bf16)

    q_in = q_ref[0].astype(f32)                              # (TQ, C)
    qp = jnp.dot(q_in.astype(bf16), wq_ref[...],
                 preferred_element_type=f32)                 # (TQ, C)
    k = k_scr[...]                                            # (N, C) bf16
    v = v_scr[...]                                            # (N, C) bf16

    # ---- per-head attention; concat folded into the output projection -------
    y = jnp.zeros_like(qp)                                    # (TQ, C) f32
    for h in range(num_heads):                                # static unroll
        lo, hi = h * hd, (h + 1) * hd
        qh = qp[:, lo:hi].astype(bf16)
        s = jnp.einsum("qd,kd->qk", qh, k[:, lo:hi],
                       preferred_element_type=f32) * scale   # (TQ, N) f32
        s = s - jnp.max(s, axis=-1, keepdims=True)
        p = jnp.exp(s)                                         # unnormalized
        denom = jnp.sum(p, axis=-1, keepdims=True)             # (TQ, 1) f32
        o_h = jnp.dot(p.astype(bf16), v[:, lo:hi],
                      preferred_element_type=f32)              # (TQ, hd)
        o_h = o_h * pl.reciprocal(denom, approx=True)          # deferred softmax norm
        y = y + jnp.dot(o_h.astype(bf16), wp_ref[lo:hi, :],
                        preferred_element_type=f32)            # (TQ, C) lane-dense
    q1 = q_in + y + bp_ref[...].astype(f32)                    # residual 1

    # ---- MLP (GELU) + residual -----------------------------------------------
    qn = layernorm(q1, g2_ref[...].astype(f32), b2_ref[...].astype(f32))
    h1 = jnp.dot(qn.astype(bf16), w1_ref[...],
                 preferred_element_type=f32) + bm1_ref[...].astype(f32)
    # TODO(synk): PyTorch nn.GELU() default is the exact erf GELU; the tanh
    # approximation is used here for guaranteed Mosaic lowering (EUP tanh).
    c = math.sqrt(2.0 / math.pi)
    h1 = 0.5 * h1 * (1.0 + jnp.tanh(c * (h1 + 0.044715 * h1 * h1 * h1)))
    h2 = jnp.dot(h1.astype(bf16), w2_ref[...],
                 preferred_element_type=f32) + bm2_ref[...].astype(f32)

    o_ref[0] = (q1 + h2).astype(o_ref.dtype)                   # residual 2


def cross_attention_block(q, x, params, *, num_heads, tile_q=None, ln_eps=1e-5):
    B, n, C = q.shape
    Bx, N, Cx = x.shape
    assert B == Bx and C == Cx
    assert C % num_heads == 0
    assert C % 128 == 0, "keep the model dim lane-dense (multiple of 128)"
    if tile_q is None:
        tile_q = min(n, 128)          # fill the MXU M dim, amortize per-step cost
    assert n % tile_q == 0 and tile_q % 8 == 0
    H = params["w1"].shape[1]
    bf16 = jnp.bfloat16

    const = lambda b, i: (0, 0)
    kernel = functools.partial(_xattn_block_kernel,
                               num_heads=num_heads, ln_eps=ln_eps)

    return pl.pallas_call(
        kernel,
        out_shape=jax.ShapeDtypeStruct((B, n, C), q.dtype),
        grid_spec=pltpu.PrefetchScalarGridSpec(
            num_scalar_prefetch=0,
            grid=(B, n // tile_q),
            in_specs=[
                pl.BlockSpec((1, tile_q, C), lambda b, i: (b, i, 0)),  # q tile
                pl.BlockSpec((1, N, C), lambda b, i: (b, 0, 0)),       # kv context
                pl.BlockSpec((1, C), const),       # norm1 gamma
                pl.BlockSpec((1, C), const),       # norm1 beta
                pl.BlockSpec((C, C), const),       # Wq    (bf16)
                pl.BlockSpec((C, 2 * C), const),   # Wkv   (bf16)
                pl.BlockSpec((C, C), const),       # Wproj (bf16)
                pl.BlockSpec((1, C), const),       # proj bias
                pl.BlockSpec((1, C), const),       # norm2 gamma
                pl.BlockSpec((1, C), const),       # norm2 beta
                pl.BlockSpec((C, H), const),       # fc1 W (bf16)
                pl.BlockSpec((1, H), const),       # fc1 b
                pl.BlockSpec((H, C), const),       # fc2 W (bf16)
                pl.BlockSpec((1, C), const),       # fc2 b
            ],
            out_specs=pl.BlockSpec((1, tile_q, C), lambda b, i: (b, i, 0)),
            scratch_shapes=[pltpu.VMEM((N, C), bf16),   # cached K (per batch elem)
                            pltpu.VMEM((N, C), bf16)],  # cached V (per batch elem)
        ),
        # Batch axis parallel (feeds both v7x TensorCores independently); the
        # q-tile axis must be "arbitrary" because the cached K/V scratch is
        # per-core and is filled only at q-tile index 0.
        compiler_params=pltpu.CompilerParams(
            dimension_semantics=("parallel", "arbitrary")),
    )(q, x,
      params["g1"], params["b1"],
      params["wq"].astype(bf16), params["wkv"].astype(bf16),
      params["wp"].astype(bf16), params["bp"],
      params["g2"], params["b2"],
      params["w1"].astype(bf16), params["bm1"],
      params["w2"].astype(bf16), params["bm2"])


# ----------------------------------------------------------------------------
# Parameter init + pure-JAX reference (mirrors the PyTorch forward semantics)
# ----------------------------------------------------------------------------
def init_params(key, dim, mlp_hidden):
    ks = jax.random.split(key, 12)
    s = 0.02
    f32 = jnp.float32
    return dict(
        g1=1.0 + 0.1 * jax.random.normal(ks[0], (1, dim), f32),
        b1=0.1 * jax.random.normal(ks[1], (1, dim), f32),
        wq=s * jax.random.normal(ks[2], (dim, dim), f32),
        wkv=s * jax.random.normal(ks[3], (dim, 2 * dim), f32),
        wp=s * jax.random.normal(ks[4], (dim, dim), f32),
        bp=0.02 * jax.random.normal(ks[5], (1, dim), f32),
        g2=1.0 + 0.1 * jax.random.normal(ks[6], (1, dim), f32),
        b2=0.1 * jax.random.normal(ks[7], (1, dim), f32),
        w1=s * jax.random.normal(ks[8], (dim, mlp_hidden), f32),
        bm1=0.02 * jax.random.normal(ks[9], (1, mlp_hidden), f32),
        w2=s * jax.random.normal(ks[10], (mlp_hidden, dim), f32),
        bm2=0.02 * jax.random.normal(ks[11], (1, dim), f32),
    )


def reference_forward(q, x, p, *, num_heads, ln_eps=1e-5):
    def ln(z, g, b):
        mu = jnp.mean(z, axis=-1, keepdims=True)
        var = jnp.mean((z - mu) ** 2, axis=-1, keepdims=True)
        return (z - mu) * jax.lax.rsqrt(var + ln_eps) * g + b

    B, n, C = q.shape
    hd = C // num_heads
    scale = hd ** -0.5

    xn = ln(x, p["g1"], p["b1"])
    qp = q @ p["wq"]
    kv = xn @ p["wkv"]
    k, v = kv[..., :C], kv[..., C:]

    def heads(t):
        return t.reshape(t.shape[0], t.shape[1], num_heads, hd).transpose(0, 2, 1, 3)

    qh, kh, vh = heads(qp), heads(k), heads(v)
    s = jnp.einsum("bhqd,bhkd->bhqk", qh, kh) * scale
    a = jax.nn.softmax(s, axis=-1)
    o = jnp.einsum("bhqk,bhkd->bhqd", a, vh)
    o = o.transpose(0, 2, 1, 3).reshape(B, n, C)

    q1 = q + (o @ p["wp"] + p["bp"])
    qn = ln(q1, p["g2"], p["b2"])
    c = math.sqrt(2.0 / math.pi)
    h1 = qn @ p["w1"] + p["bm1"]
    h1 = 0.5 * h1 * (1.0 + jnp.tanh(c * (h1 + 0.044715 * h1 ** 3)))
    return q1 + (h1 @ p["w2"] + p["bm2"])


# ----------------------------------------------------------------------------
# main
# ----------------------------------------------------------------------------
if __name__ == "__main__":
    key = jax.random.PRNGKey(0)
    kp, kq, kx = jax.random.split(key, 3)

    # Small, lane-dense shapes: dim = 128 (full 128-lane vreg), 4 heads,
    # 16 query tokens, 32 context tokens, batch 2.
    B, n_q, N_kv = 2, 16, 32
    dim, num_heads = 128, 4
    mlp_hidden = 4 * dim

    params = init_params(kp, dim, mlp_hidden)
    q = jax.random.normal(kq, (B, n_q, dim), jnp.float32)
    x = jax.random.normal(kx, (B, N_kv, dim), jnp.float32)

    ref = jax.block_until_ready(
        reference_forward(q, x, params, num_heads=num_heads))

    # Default tiling: tile_q = min(n, 128) -> grid (B, 1).
    out = jax.block_until_ready(
        cross_attention_block(q, x, params, num_heads=num_heads))
    assert out.shape == (B, n_q, dim), out.shape
    assert bool(jnp.all(jnp.isfinite(out)))
    err = float(jnp.max(jnp.abs(out - ref)))
    assert err < 2e-2, f"max abs error vs reference (default tile_q): {err}"

    # Multi-tile run exercising the cached-KV reuse path (grid (B, 2)).
    out2 = jax.block_until_ready(
        cross_attention_block(q, x, params, num_heads=num_heads, tile_q=8))
    err2 = float(jnp.max(jnp.abs(out2 - ref)))
    assert err2 < 2e-2, f"max abs error vs reference (tile_q=8): {err2}"

    print("KERNEL_OK")
</pallas_src>

<mosaic_0001>
module attributes {stable_mosaic.version = 11 : i64} {
  func.func @_xattn_block_kernel(%arg0: i32, %arg1: i32, %arg2: memref<1x16x128xf32, #tpu.memory_space<vmem>>, %arg3: memref<1x32x128xf32, #tpu.memory_space<vmem>>, %arg4: memref<1x128xf32, #tpu.memory_space<vmem>>, %arg5: memref<1x128xf32, #tpu.memory_space<vmem>>, %arg6: memref<128x128xbf16, #tpu.memory_space<vmem>>, %arg7: memref<128x256xbf16, #tpu.memory_space<vmem>>, %arg8: memref<128x128xbf16, #tpu.memory_space<vmem>>, %arg9: memref<1x128xf32, #tpu.memory_space<vmem>>, %arg10: memref<1x128xf32, #tpu.memory_space<vmem>>, %arg11: memref<1x128xf32, #tpu.memory_space<vmem>>, %arg12: memref<128x512xbf16, #tpu.memory_space<vmem>>, %arg13: memref<1x512xf32, #tpu.memory_space<vmem>>, %arg14: memref<512x128xbf16, #tpu.memory_space<vmem>>, %arg15: memref<1x128xf32, #tpu.memory_space<vmem>>, %arg16: memref<1x16x128xf32, #tpu.memory_space<vmem>>, %arg17: memref<32x128xbf16, #tpu.memory_space<vmem>>, %arg18: memref<32x128xbf16, #tpu.memory_space<vmem>>) attributes {dimension_semantics = [#tpu.dimension_semantics<parallel>, #tpu.dimension_semantics<arbitrary>], iteration_bounds = array<i64: 2, 1>, scalar_prefetch = 0 : i64, scratch_operands = 2 : i64, tpu.core_type = #tpu.core_type<tc>, window_params = [{transform_indices = @transform_0, window_bounds = array<i64: 1, 16, 128>}, {transform_indices = @transform_1, window_bounds = array<i64: 1, 32, 128>}, {pipeline_mode = #tpu.pipeline_mode<synchronous>, transform_indices = @transform_2, window_bounds = array<i64: 1, 128>}, {pipeline_mode = #tpu.pipeline_mode<synchronous>, transform_indices = @transform_3, window_bounds = array<i64: 1, 128>}, {pipeline_mode = #tpu.pipeline_mode<synchronous>, transform_indices = @transform_4, window_bounds = array<i64: 128, 128>}, {pipeline_mode = #tpu.pipeline_mode<synchronous>, transform_indices = @transform_5, window_bounds = array<i64: 128, 256>}, {pipeline_mode = #tpu.pipeline_mode<synchronous>, transform_indices = @transform_6, window_bounds = array<i64: 128, 128>}, {pipeline_mode = #tpu.pipeline_mode<synchronous>, transform_indices = @transform_7, window_bounds = array<i64: 1, 128>}, {pipeline_mode = #tpu.pipeline_mode<synchronous>, transform_indices = @transform_8, window_bounds = array<i64: 1, 128>}, {pipeline_mode = #tpu.pipeline_mode<synchronous>, transform_indices = @transform_9, window_bounds = array<i64: 1, 128>}, {pipeline_mode = #tpu.pipeline_mode<synchronous>, transform_indices = @transform_10, window_bounds = array<i64: 128, 512>}, {pipeline_mode = #tpu.pipeline_mode<synchronous>, transform_indices = @transform_11, window_bounds = array<i64: 1, 512>}, {pipeline_mode = #tpu.pipeline_mode<synchronous>, transform_indices = @transform_12, window_bounds = array<i64: 512, 128>}, {pipeline_mode = #tpu.pipeline_mode<synchronous>, transform_indices = @transform_13, window_bounds = array<i64: 1, 128>}, {transform_indices = @transform_14, window_bounds = array<i64: 1, 16, 128>}]} {
    %c0_i32 = arith.constant 0 : i32
    %0 = arith.cmpi eq, %arg1, %c0_i32 : i32
    %1 = arith.extui %0 : i1 to i32
    %c0_i32_0 = arith.constant 0 : i32
    %2 = arith.cmpi ne, %1, %c0_i32_0 : i32
    scf.if %2 {
      %c0_67 = arith.constant 0 : index
      %c0_68 = arith.constant 0 : index
      %c0_69 = arith.constant 0 : index
      %162 = vector.load %arg3[%c0_67, %c0_68, %c0_69] : memref<1x32x128xf32, #tpu.memory_space<vmem>>, vector<1x32x128xf32>
      %163 = vector.shape_cast %162 : vector<1x32x128xf32> to vector<32x128xf32>
      %c0_70 = arith.constant 0 : index
      %c0_71 = arith.constant 0 : index
      %164 = vector.load %arg4[%c0_70, %c0_71] : memref<1x128xf32, #tpu.memory_space<vmem>>, vector<1x128xf32>
      %c0_72 = arith.constant 0 : index
      %c0_73 = arith.constant 0 : index
      %165 = vector.load %arg5[%c0_72, %c0_73] : memref<1x128xf32, #tpu.memory_space<vmem>>, vector<1x128xf32>
      %cst_74 = arith.constant dense<0.000000e+00> : vector<32xf32>
      %166 = vector.multi_reduction <add>, %163, %cst_74 [1] : vector<32x128xf32> to vector<32xf32>
      %167 = vector.shape_cast %166 : vector<32xf32> to vector<32x1xf32>
      %cst_75 = arith.constant 1.280000e+02 : f32
      %168 = vector.broadcast %cst_75 : f32 to vector<32x1xf32>
      %169 = arith.divf %167, %168 : vector<32x1xf32>
      %170 = vector.broadcast %169 : vector<32x1xf32> to vector<32x128xf32>
      %171 = arith.subf %163, %170 : vector<32x128xf32>
      %172 = vector.broadcast %169 : vector<32x1xf32> to vector<32x128xf32>
      %173 = arith.subf %163, %172 : vector<32x128xf32>
      %174 = arith.mulf %171, %173 : vector<32x128xf32>
      %cst_76 = arith.constant dense<0.000000e+00> : vector<32xf32>
      %175 = vector.multi_reduction <add>, %174, %cst_76 [1] : vector<32x128xf32> to vector<32xf32>
      %176 = vector.shape_cast %175 : vector<32xf32> to vector<32x1xf32>
      %cst_77 = arith.constant 1.280000e+02 : f32
      %177 = vector.broadcast %cst_77 : f32 to vector<32x1xf32>
      %178 = arith.divf %176, %177 : vector<32x1xf32>
      %179 = vector.broadcast %169 : vector<32x1xf32> to vector<32x128xf32>
      %180 = arith.subf %163, %179 : vector<32x128xf32>
      %cst_78 = arith.constant 9.99999974E-6 : f32
      %181 = vector.broadcast %cst_78 : f32 to vector<32x1xf32>
      %182 = arith.addf %178, %181 : vector<32x1xf32>
      %183 = math.rsqrt %182 : vector<32x1xf32>
      %184 = vector.broadcast %183 : vector<32x1xf32> to vector<32x128xf32>
      %185 = arith.mulf %180, %184 : vector<32x128xf32>
      %186 = vector.broadcast %164 : vector<1x128xf32> to vector<32x128xf32>
      %187 = arith.mulf %185, %186 : vector<32x128xf32>
      %188 = vector.broadcast %165 : vector<1x128xf32> to vector<32x128xf32>
      %189 = arith.addf %187, %188 : vector<32x128xf32>
      %190 = arith.truncf %189 : vector<32x128xf32> to vector<32x128xbf16>
      %c0_79 = arith.constant 0 : index
      %c0_80 = arith.constant 0 : index
      %191 = vector.load %arg7[%c0_79, %c0_80] : memref<128x256xbf16, #tpu.memory_space<vmem>>, vector<128x256xbf16>
      %cst_81 = arith.constant dense<0.000000e+00> : vector<32x256xf32>
      %192 = tpu.matmul %190, %191, %cst_81 {dimension_numbers = #tpu.dot_dimension_numbers<[1], [0], [0], [1], [0, 0, 1, 1], [], []>} : vector<32x128xbf16>, vector<128x256xbf16>, vector<32x256xf32> -> vector<32x256xf32>
      %193 = vector.extract_strided_slice %192 {offsets = [0, 0], sizes = [32, 128], strides = [1, 1]} : vector<32x256xf32> to vector<32x128xf32>
      %194 = arith.truncf %193 : vector<32x128xf32> to vector<32x128xbf16>
      %c0_82 = arith.constant 0 : index
      %c0_83 = arith.constant 0 : index
      %195 = vector.load %arg17[%c0_82, %c0_83] : memref<32x128xbf16, #tpu.memory_space<vmem>>, vector<32x128xbf16>
      tpu.vector_store %arg17[%c0_82, %c0_83], %194 {strides = array<i32>} : memref<32x128xbf16, #tpu.memory_space<vmem>>, vector<32x128xbf16>,
      %196 = vector.extract_strided_slice %192 {offsets = [0, 128], sizes = [32, 128], strides = [1, 1]} : vector<32x256xf32> to vector<32x128xf32>
      %197 = arith.truncf %196 : vector<32x128xf32> to vector<32x128xbf16>
      %c0_84 = arith.constant 0 : index
      %c0_85 = arith.constant 0 : index
      %198 = vector.load %arg18[%c0_84, %c0_85] : memref<32x128xbf16, #tpu.memory_space<vmem>>, vector<32x128xbf16>
      tpu.vector_store %arg18[%c0_84, %c0_85], %197 {strides = array<i32>} : memref<32x128xbf16, #tpu.memory_space<vmem>>, vector<32x128xbf16>,
    } else {
    }
    %c0 = arith.constant 0 : index
    %c0_1 = arith.constant 0 : index
    %c0_2 = arith.constant 0 : index
    %3 = vector.load %arg2[%c0, %c0_1, %c0_2] : memref<1x16x128xf32, #tpu.memory_space<vmem>>, vector<1x16x128xf32>
    %4 = vector.shape_cast %3 : vector<1x16x128xf32> to vector<16x128xf32>
    %5 = arith.truncf %4 : vector<16x128xf32> to vector<16x128xbf16>
    %c0_3 = arith.constant 0 : index
    %c0_4 = arith.constant 0 : index
    %6 = vector.load %arg6[%c0_3, %c0_4] : memref<128x128xbf16, #tpu.memory_space<vmem>>, vector<128x128xbf16>
    %cst = arith.constant dense<0.000000e+00> : vector<16x128xf32>
    %7 = tpu.matmul %5, %6, %cst {dimension_numbers = #tpu.dot_dimension_numbers<[1], [0], [0], [1], [0, 0, 1, 1], [], []>} : vector<16x128xbf16>, vector<128x128xbf16>, vector<16x128xf32> -> vector<16x128xf32>
    %c0_5 = arith.constant 0 : index
    %c0_6 = arith.constant 0 : index
    %8 = vector.load %arg17[%c0_5, %c0_6] : memref<32x128xbf16, #tpu.memory_space<vmem>>, vector<32x128xbf16>
    %c0_7 = arith.constant 0 : index
    %c0_8 = arith.constant 0 : index
    %9 = vector.load %arg18[%c0_7, %c0_8] : memref<32x128xbf16, #tpu.memory_space<vmem>>, vector<32x128xbf16>
    %cst_9 = arith.constant 0.000000e+00 : f32
    %10 = vector.broadcast %cst_9 : f32 to vector<16x128xf32>
    %11 = vector.extract_strided_slice %7 {offsets = [0, 0], sizes = [16, 32], strides = [1, 1]} : vector<16x128xf32> to vector<16x32xf32>
    %12 = arith.truncf %11 : vector<16x32xf32> to vector<16x32xbf16>
    %13 = vector.extract_strided_slice %8 {offsets = [0, 0], sizes = [32, 32], strides = [1, 1]} : vector<32x128xbf16> to vector<32x32xbf16>
    "tpu.trace_start"() <{level = 10 : i32, message = "qd,kd->qk"}> : () -> ()
    %cst_10 = arith.constant dense<0.000000e+00> : vector<16x32xf32>
    %14 = tpu.matmul %12, %13, %cst_10 {dimension_numbers = #tpu.dot_dimension_numbers<[1], [1], [0], [0], [0, 0, 1, 0], [], []>} : vector<16x32xbf16>, vector<32x32xbf16>, vector<16x32xf32> -> vector<16x32xf32>
    "tpu.trace_stop"() : () -> ()
    %cst_11 = arith.constant 0.176776692 : f32
    %15 = vector.broadcast %cst_11 : f32 to vector<16x32xf32>
    %16 = arith.mulf %14, %15 : vector<16x32xf32>
    %cst_12 = arith.constant dense<0xFF800000> : vector<16xf32>
    %17 = vector.multi_reduction <maximumf>, %16, %cst_12 [1] : vector<16x32xf32> to vector<16xf32>
    %18 = vector.shape_cast %17 : vector<16xf32> to vector<16x1xf32>
    %19 = vector.broadcast %18 : vector<16x1xf32> to vector<16x32xf32>
    %20 = arith.subf %16, %19 : vector<16x32xf32>
    %21 = math.exp %20 : vector<16x32xf32>
    %cst_13 = arith.constant dense<0.000000e+00> : vector<16xf32>
    %22 = vector.multi_reduction <add>, %21, %cst_13 [1] : vector<16x32xf32> to vector<16xf32>
    %23 = vector.shape_cast %22 : vector<16xf32> to vector<16x1xf32>
    %24 = arith.truncf %21 : vector<16x32xf32> to vector<16x32xbf16>
    %25 = vector.extract_strided_slice %9 {offsets = [0, 0], sizes = [32, 32], strides = [1, 1]} : vector<32x128xbf16> to vector<32x32xbf16>
    %cst_14 = arith.constant dense<0.000000e+00> : vector<16x32xf32>
    %26 = tpu.matmul %24, %25, %cst_14 {dimension_numbers = #tpu.dot_dimension_numbers<[1], [0], [0], [1], [0, 0, 1, 1], [], []>} : vector<16x32xbf16>, vector<32x32xbf16>, vector<16x32xf32> -> vector<16x32xf32>
    %27 = tpu.reciprocal %23 {approx = true} : vector<16x1xf32> -> vector<16x1xf32>
    %28 = vector.broadcast %27 : vector<16x1xf32> to vector<16x32xf32>
    %29 = arith.mulf %26, %28 : vector<16x32xf32>
    %30 = arith.truncf %29 : vector<16x32xf32> to vector<16x32xbf16>
    %c0_15 = arith.constant 0 : index
    %c0_16 = arith.constant 0 : index
    %31 = vector.load %arg8[%c0_15, %c0_16] : memref<128x128xbf16, #tpu.memory_space<vmem>>, vector<32x128xbf16>
    %cst_17 = arith.constant dense<0.000000e+00> : vector<16x128xf32>
    %32 = tpu.matmul %30, %31, %cst_17 {dimension_numbers = #tpu.dot_dimension_numbers<[1], [0], [0], [1], [0, 0, 1, 1], [], []>} : vector<16x32xbf16>, vector<32x128xbf16>, vector<16x128xf32> -> vector<16x128xf32>
    %33 = arith.addf %10, %32 : vector<16x128xf32>
    %34 = vector.extract_strided_slice %7 {offsets = [0, 32], sizes = [16, 32], strides = [1, 1]} : vector<16x128xf32> to vector<16x32xf32>
    %35 = arith.truncf %34 : vector<16x32xf32> to vector<16x32xbf16>
    %36 = vector.extract_strided_slice %8 {offsets = [0, 32], sizes = [32, 32], strides = [1, 1]} : vector<32x128xbf16> to vector<32x32xbf16>
    "tpu.trace_start"() <{level = 10 : i32, message = "qd,kd->qk"}> : () -> ()
    %cst_18 = arith.constant dense<0.000000e+00> : vector<16x32xf32>
    %37 = tpu.matmul %35, %36, %cst_18 {dimension_numbers = #tpu.dot_dimension_numbers<[1], [1], [0], [0], [0, 0, 1, 0], [], []>} : vector<16x32xbf16>, vector<32x32xbf16>, vector<16x32xf32> -> vector<16x32xf32>
    "tpu.trace_stop"() : () -> ()
    %cst_19 = arith.constant 0.176776692 : f32
    %38 = vector.broadcast %cst_19 : f32 to vector<16x32xf32>
    %39 = arith.mulf %37, %38 : vector<16x32xf32>
    %cst_20 = arith.constant dense<0xFF800000> : vector<16xf32>
    %40 = vector.multi_reduction <maximumf>, %39, %cst_20 [1] : vector<16x32xf32> to vector<16xf32>
    %41 = vector.shape_cast %40 : vector<16xf32> to vector<16x1xf32>
    %42 = vector.broadcast %41 : vector<16x1xf32> to vector<16x32xf32>
    %43 = arith.subf %39, %42 : vector<16x32xf32>
    %44 = math.exp %43 : vector<16x32xf32>
    %cst_21 = arith.constant dense<0.000000e+00> : vector<16xf32>
    %45 = vector.multi_reduction <add>, %44, %cst_21 [1] : vector<16x32xf32> to vector<16xf32>
    %46 = vector.shape_cast %45 : vector<16xf32> to vector<16x1xf32>
    %47 = arith.truncf %44 : vector<16x32xf32> to vector<16x32xbf16>
    %48 = vector.extract_strided_slice %9 {offsets = [0, 32], sizes = [32, 32], strides = [1, 1]} : vector<32x128xbf16> to vector<32x32xbf16>
    %cst_22 = arith.constant dense<0.000000e+00> : vector<16x32xf32>
    %49 = tpu.matmul %47, %48, %cst_22 {dimension_numbers = #tpu.dot_dimension_numbers<[1], [0], [0], [1], [0, 0, 1, 1], [], []>} : vector<16x32xbf16>, vector<32x32xbf16>, vector<16x32xf32> -> vector<16x32xf32>
    %50 = tpu.reciprocal %46 {approx = true} : vector<16x1xf32> -> vector<16x1xf32>
    %51 = vector.broadcast %50 : vector<16x1xf32> to vector<16x32xf32>
    %52 = arith.mulf %49, %51 : vector<16x32xf32>
    %53 = arith.truncf %52 : vector<16x32xf32> to vector<16x32xbf16>
    %c32 = arith.constant 32 : index
    %c0_23 = arith.constant 0 : index
    %54 = vector.load %arg8[%c32, %c0_23] : memref<128x128xbf16, #tpu.memory_space<vmem>>, vector<32x128xbf16>
    %cst_24 = arith.constant dense<0.000000e+00> : vector<16x128xf32>
    %55 = tpu.matmul %53, %54, %cst_24 {dimension_numbers = #tpu.dot_dimension_numbers<[1], [0], [0], [1], [0, 0, 1, 1], [], []>} : vector<16x32xbf16>, vector<32x128xbf16>, vector<16x128xf32> -> vector<16x128xf32>
    %56 = arith.addf %33, %55 : vector<16x128xf32>
    %57 = vector.extract_strided_slice %7 {offsets = [0, 64], sizes = [16, 32], strides = [1, 1]} : vector<16x128xf32> to vector<16x32xf32>
    %58 = arith.truncf %57 : vector<16x32xf32> to vector<16x32xbf16>
    %59 = vector.extract_strided_slice %8 {offsets = [0, 64], sizes = [32, 32], strides = [1, 1]} : vector<32x128xbf16> to vector<32x32xbf16>
    "tpu.trace_start"() <{level = 10 : i32, message = "qd,kd->qk"}> : () -> ()
    %cst_25 = arith.constant dense<0.000000e+00> : vector<16x32xf32>
    %60 = tpu.matmul %58, %59, %cst_25 {dimension_numbers = #tpu.dot_dimension_numbers<[1], [1], [0], [0], [0, 0, 1, 0], [], []>} : vector<16x32xbf16>, vector<32x32xbf16>, vector<16x32xf32> -> vector<16x32xf32>
    "tpu.trace_stop"() : () -> ()
    %cst_26 = arith.constant 0.176776692 : f32
    %61 = vector.broadcast %cst_26 : f32 to vector<16x32xf32>
    %62 = arith.mulf %60, %61 : vector<16x32xf32>
    %cst_27 = arith.constant dense<0xFF800000> : vector<16xf32>
    %63 = vector.multi_reduction <maximumf>, %62, %cst_27 [1] : vector<16x32xf32> to vector<16xf32>
    %64 = vector.shape_cast %63 : vector<16xf32> to vector<16x1xf32>
    %65 = vector.broadcast %64 : vector<16x1xf32> to vector<16x32xf32>
    %66 = arith.subf %62, %65 : vector<16x32xf32>
    %67 = math.exp %66 : vector<16x32xf32>
    %cst_28 = arith.constant dense<0.000000e+00> : vector<16xf32>
    %68 = vector.multi_reduction <add>, %67, %cst_28 [1] : vector<16x32xf32> to vector<16xf32>
    %69 = vector.shape_cast %68 : vector<16xf32> to vector<16x1xf32>
    %70 = arith.truncf %67 : vector<16x32xf32> to vector<16x32xbf16>
    %71 = vector.extract_strided_slice %9 {offsets = [0, 64], sizes = [32, 32], strides = [1, 1]} : vector<32x128xbf16> to vector<32x32xbf16>
    %cst_29 = arith.constant dense<0.000000e+00> : vector<16x32xf32>
    %72 = tpu.matmul %70, %71, %cst_29 {dimension_numbers = #tpu.dot_dimension_numbers<[1], [0], [0], [1], [0, 0, 1, 1], [], []>} : vector<16x32xbf16>, vector<32x32xbf16>, vector<16x32xf32> -> vector<16x32xf32>
    %73 = tpu.reciprocal %69 {approx = true} : vector<16x1xf32> -> vector<16x1xf32>
    %74 = vector.broadcast %73 : vector<16x1xf32> to vector<16x32xf32>
    %75 = arith.mulf %72, %74 : vector<16x32xf32>
    %76 = arith.truncf %75 : vector<16x32xf32> to vector<16x32xbf16>
    %c64 = arith.constant 64 : index
    %c0_30 = arith.constant 0 : index
    %77 = vector.load %arg8[%c64, %c0_30] : memref<128x128xbf16, #tpu.memory_space<vmem>>, vector<32x128xbf16>
    %cst_31 = arith.constant dense<0.000000e+00> : vector<16x128xf32>
    %78 = tpu.matmul %76, %77, %cst_31 {dimension_numbers = #tpu.dot_dimension_numbers<[1], [0], [0], [1], [0, 0, 1, 1], [], []>} : vector<16x32xbf16>, vector<32x128xbf16>, vector<16x128xf32> -> vector<16x128xf32>
    %79 = arith.addf %56, %78 : vector<16x128xf32>
    %80 = vector.extract_strided_slice %7 {offsets = [0, 96], sizes = [16, 32], strides = [1, 1]} : vector<16x128xf32> to vector<16x32xf32>
    %81 = arith.truncf %80 : vector<16x32xf32> to vector<16x32xbf16>
    %82 = vector.extract_strided_slice %8 {offsets = [0, 96], sizes = [32, 32], strides = [1, 1]} : vector<32x128xbf16> to vector<32x32xbf16>
    "tpu.trace_start"() <{level = 10 : i32, message = "qd,kd->qk"}> : () -> ()
    %cst_32 = arith.constant dense<0.000000e+00> : vector<16x32xf32>
    %83 = tpu.matmul %81, %82, %cst_32 {dimension_numbers = #tpu.dot_dimension_numbers<[1], [1], [0], [0], [0, 0, 1, 0], [], []>} : vector<16x32xbf16>, vector<32x32xbf16>, vector<16x32xf32> -> vector<16x32xf32>
    "tpu.trace_stop"() : () -> ()
    %cst_33 = arith.constant 0.176776692 : f32
    %84 = vector.broadcast %cst_33 : f32 to vector<16x32xf32>
    %85 = arith.mulf %83, %84 : vector<16x32xf32>
    %cst_34 = arith.constant dense<0xFF800000> : vector<16xf32>
    %86 = vector.multi_reduction <maximumf>, %85, %cst_34 [1] : vector<16x32xf32> to vector<16xf32>
    %87 = vector.shape_cast %86 : vector<16xf32> to vector<16x1xf32>
    %88 = vector.broadcast %87 : vector<16x1xf32> to vector<16x32xf32>
    %89 = arith.subf %85, %88 : vector<16x32xf32>
    %90 = math.exp %89 : vector<16x32xf32>
    %cst_35 = arith.constant dense<0.000000e+00> : vector<16xf32>
    %91 = vector.multi_reduction <add>, %90, %cst_35 [1] : vector<16x32xf32> to vector<16xf32>
    %92 = vector.shape_cast %91 : vector<16xf32> to vector<16x1xf32>
    %93 = arith.truncf %90 : vector<16x32xf32> to vector<16x32xbf16>
    %94 = vector.extract_strided_slice %9 {offsets = [0, 96], sizes = [32, 32], strides = [1, 1]} : vector<32x128xbf16> to vector<32x32xbf16>
    %cst_36 = arith.constant dense<0.000000e+00> : vector<16x32xf32>
    %95 = tpu.matmul %93, %94, %cst_36 {dimension_numbers = #tpu.dot_dimension_numbers<[1], [0], [0], [1], [0, 0, 1, 1], [], []>} : vector<16x32xbf16>, vector<32x32xbf16>, vector<16x32xf32> -> vector<16x32xf32>
    %96 = tpu.reciprocal %92 {approx = true} : vector<16x1xf32> -> vector<16x1xf32>
    %97 = vector.broadcast %96 : vector<16x1xf32> to vector<16x32xf32>
    %98 = arith.mulf %95, %97 : vector<16x32xf32>
    %99 = arith.truncf %98 : vector<16x32xf32> to vector<16x32xbf16>
    %c96 = arith.constant 96 : index
    %c0_37 = arith.constant 0 : index
    %100 = vector.load %arg8[%c96, %c0_37] : memref<128x128xbf16, #tpu.memory_space<vmem>>, vector<32x128xbf16>
    %cst_38 = arith.constant dense<0.000000e+00> : vector<16x128xf32>
    %101 = tpu.matmul %99, %100, %cst_38 {dimension_numbers = #tpu.dot_dimension_numbers<[1], [0], [0], [1], [0, 0, 1, 1], [], []>} : vector<16x32xbf16>, vector<32x128xbf16>, vector<16x128xf32> -> vector<16x128xf32>
    %102 = arith.addf %79, %101 : vector<16x128xf32>
    %103 = arith.addf %4, %102 : vector<16x128xf32>
    %c0_39 = arith.constant 0 : index
    %c0_40 = arith.constant 0 : index
    %104 = vector.load %arg9[%c0_39, %c0_40] : memref<1x128xf32, #tpu.memory_space<vmem>>, vector<1x128xf32>
    %105 = vector.broadcast %104 : vector<1x128xf32> to vector<16x128xf32>
    %106 = arith.addf %103, %105 : vector<16x128xf32>
    %c0_41 = arith.constant 0 : index
    %c0_42 = arith.constant 0 : index
    %107 = vector.load %arg10[%c0_41, %c0_42] : memref<1x128xf32, #tpu.memory_space<vmem>>, vector<1x128xf32>
    %c0_43 = arith.constant 0 : index
    %c0_44 = arith.constant 0 : index
    %108 = vector.load %arg11[%c0_43, %c0_44] : memref<1x128xf32, #tpu.memory_space<vmem>>, vector<1x128xf32>
    %cst_45 = arith.constant dense<0.000000e+00> : vector<16xf32>
    %109 = vector.multi_reduction <add>, %106, %cst_45 [1] : vector<16x128xf32> to vector<16xf32>
    %110 = vector.shape_cast %109 : vector<16xf32> to vector<16x1xf32>
    %cst_46 = arith.constant 1.280000e+02 : f32
    %111 = vector.broadcast %cst_46 : f32 to vector<16x1xf32>
    %112 = arith.divf %110, %111 : vector<16x1xf32>
    %113 = vector.broadcast %112 : vector<16x1xf32> to vector<16x128xf32>
    %114 = arith.subf %106, %113 : vector<16x128xf32>
    %115 = vector.broadcast %112 : vector<16x1xf32> to vector<16x128xf32>
    %116 = arith.subf %106, %115 : vector<16x128xf32>
    %117 = arith.mulf %114, %116 : vector<16x128xf32>
    %cst_47 = arith.constant dense<0.000000e+00> : vector<16xf32>
    %118 = vector.multi_reduction <add>, %117, %cst_47 [1] : vector<16x128xf32> to vector<16xf32>
    %119 = vector.shape_cast %118 : vector<16xf32> to vector<16x1xf32>
    %cst_48 = arith.constant 1.280000e+02 : f32
    %120 = vector.broadcast %cst_48 : f32 to vector<16x1xf32>
    %121 = arith.divf %119, %120 : vector<16x1xf32>
    %122 = vector.broadcast %112 : vector<16x1xf32> to vector<16x128xf32>
    %123 = arith.subf %106, %122 : vector<16x128xf32>
    %cst_49 = arith.constant 9.99999974E-6 : f32
    %124 = vector.broadcast %cst_49 : f32 to vector<16x1xf32>
    %125 = arith.addf %121, %124 : vector<16x1xf32>
    %126 = math.rsqrt %125 : vector<16x1xf32>
    %127 = vector.broadcast %126 : vector<16x1xf32> to vector<16x128xf32>
    %128 = arith.mulf %123, %127 : vector<16x128xf32>
    %129 = vector.broadcast %107 : vector<1x128xf32> to vector<16x128xf32>
    %130 = arith.mulf %128, %129 : vector<16x128xf32>
    %131 = vector.broadcast %108 : vector<1x128xf32> to vector<16x128xf32>
    %132 = arith.addf %130, %131 : vector<16x128xf32>
    %133 = arith.truncf %132 : vector<16x128xf32> to vector<16x128xbf16>
    %c0_50 = arith.constant 0 : index
    %c0_51 = arith.constant 0 : index
    %134 = vector.load %arg12[%c0_50, %c0_51] : memref<128x512xbf16, #tpu.memory_space<vmem>>, vector<128x512xbf16>
    %cst_52 = arith.constant dense<0.000000e+00> : vector<16x512xf32>
    %135 = tpu.matmul %133, %134, %cst_52 {dimension_numbers = #tpu.dot_dimension_numbers<[1], [0], [0], [1], [0, 0, 1, 1], [], []>} : vector<16x128xbf16>, vector<128x512xbf16>, vector<16x512xf32> -> vector<16x512xf32>
    %c0_53 = arith.constant 0 : index
    %c0_54 = arith.constant 0 : index
    %136 = vector.load %arg13[%c0_53, %c0_54] : memref<1x512xf32, #tpu.memory_space<vmem>>, vector<1x512xf32>
    %137 = vector.broadcast %136 : vector<1x512xf32> to vector<16x512xf32>
    %138 = arith.addf %135, %137 : vector<16x512xf32>
    %cst_55 = arith.constant 5.000000e-01 : f32
    %139 = vector.broadcast %cst_55 : f32 to vector<16x512xf32>
    %140 = arith.mulf %139, %138 : vector<16x512xf32>
    %cst_56 = arith.constant 4.471500e-02 : f32
    %141 = vector.broadcast %cst_56 : f32 to vector<16x512xf32>
    %142 = arith.mulf %141, %138 : vector<16x512xf32>
    %143 = arith.mulf %142, %138 : vector<16x512xf32>
    %144 = arith.mulf %143, %138 : vector<16x512xf32>
    %145 = arith.addf %138, %144 : vector<16x512xf32>
    %cst_57 = arith.constant 0.797884583 : f32
    %146 = vector.broadcast %cst_57 : f32 to vector<16x512xf32>
    %147 = arith.mulf %146, %145 : vector<16x512xf32>
    %148 = math.tanh %147 : vector<16x512xf32>
    %cst_58 = arith.constant 1.000000e+00 : f32
    %149 = vector.broadcast %cst_58 : f32 to vector<16x512xf32>
    %150 = arith.addf %149, %148 : vector<16x512xf32>
    %151 = arith.mulf %140, %150 : vector<16x512xf32>
    %152 = arith.truncf %151 : vector<16x512xf32> to vector<16x512xbf16>
    %c0_59 = arith.constant 0 : index
    %c0_60 = arith.constant 0 : index
    %153 = vector.load %arg14[%c0_59, %c0_60] : memref<512x128xbf16, #tpu.memory_space<vmem>>, vector<512x128xbf16>
    %cst_61 = arith.constant dense<0.000000e+00> : vector<16x128xf32>
    %154 = tpu.matmul %152, %153, %cst_61 {dimension_numbers = #tpu.dot_dimension_numbers<[1], [0], [0], [1], [0, 0, 1, 1], [], []>} : vector<16x512xbf16>, vector<512x128xbf16>, vector<16x128xf32> -> vector<16x128xf32>
    %c0_62 = arith.constant 0 : index
    %c0_63 = arith.constant 0 : index
    %155 = vector.load %arg15[%c0_62, %c0_63] : memref<1x128xf32, #tpu.memory_space<vmem>>, vector<1x128xf32>
    %156 = vector.broadcast %155 : vector<1x128xf32> to vector<16x128xf32>
    %157 = arith.addf %154, %156 : vector<16x128xf32>
    %158 = arith.addf %106, %157 : vector<16x128xf32>
    %c0_64 = arith.constant 0 : index
    %c0_65 = arith.constant 0 : index
    %c0_66 = arith.constant 0 : index
    %159 = vector.load %arg16[%c0_64, %c0_65, %c0_66] : memref<1x16x128xf32, #tpu.memory_space<vmem>>, vector<1x16x128xf32>
    %160 = vector.shape_cast %159 : vector<1x16x128xf32> to vector<16x128xf32>
    %161 = vector.shape_cast %158 : vector<16x128xf32> to vector<1x16x128xf32>
    tpu.vector_store %arg16[%c0_64, %c0_65, %c0_66], %161 {strides = array<i32>} : memref<1x16x128xf32, #tpu.memory_space<vmem>>, vector<1x16x128xf32>,
    return
  }
  func.func @transform_0(%arg0: i32, %arg1: i32) -> (i32, i32, i32) {
    %c0_i32 = arith.constant 0 : i32
    %c0_i32_0 = arith.constant 0 : i32
    return %arg0, %arg1, %c0_i32 : i32, i32, i32
  }
  func.func @transform_1(%arg0: i32, %arg1: i32) -> (i32, i32, i32) {
    %c0_i32 = arith.constant 0 : i32
    %c0_i32_0 = arith.constant 0 : i32
    %c0_i32_1 = arith.constant 0 : i32
    return %arg0, %c0_i32, %c0_i32_0 : i32, i32, i32
  }
  func.func @transform_2(%arg0: i32, %arg1: i32) -> (i32, i32) {
    %c0_i32 = arith.constant 0 : i32
    %c0_i32_0 = arith.constant 0 : i32
    %c0_i32_1 = arith.constant 0 : i32
    return %c0_i32, %c0_i32_0 : i32, i32
  }
  func.func @transform_3(%arg0: i32, %arg1: i32) -> (i32, i32) {
    %c0_i32 = arith.constant 0 : i32
    %c0_i32_0 = arith.constant 0 : i32
    %c0_i32_1 = arith.constant 0 : i32
    return %c0_i32, %c0_i32_0 : i32, i32
  }
  func.func @transform_4(%arg0: i32, %arg1: i32) -> (i32, i32) {
    %c0_i32 = arith.constant 0 : i32
    %c0_i32_0 = arith.constant 0 : i32
    %c0_i32_1 = arith.constant 0 : i32
    return %c0_i32, %c0_i32_0 : i32, i32
  }
  func.func @transform_5(%arg0: i32, %arg1: i32) -> (i32, i32) {
    %c0_i32 = arith.constant 0 : i32
    %c0_i32_0 = arith.constant 0 : i32
    %c0_i32_1 = arith.constant 0 : i32
    return %c0_i32, %c0_i32_0 : i32, i32
  }
  func.func @transform_6(%arg0: i32, %arg1: i32) -> (i32, i32) {
    %c0_i32 = arith.constant 0 : i32
    %c0_i32_0 = arith.constant 0 : i32
    %c0_i32_1 = arith.constant 0 : i32
    return %c0_i32, %c0_i32_0 : i32, i32
  }
  func.func @transform_7(%arg0: i32, %arg1: i32) -> (i32, i32) {
    %c0_i32 = arith.constant 0 : i32
    %c0_i32_0 = arith.constant 0 : i32
    %c0_i32_1 = arith.constant 0 : i32
    return %c0_i32, %c0_i32_0 : i32, i32
  }
  func.func @transform_8(%arg0: i32, %arg1: i32) -> (i32, i32) {
    %c0_i32 = arith.constant 0 : i32
    %c0_i32_0 = arith.constant 0 : i32
    %c0_i32_1 = arith.constant 0 : i32
    return %c0_i32, %c0_i32_0 : i32, i32
  }
  func.func @transform_9(%arg0: i32, %arg1: i32) -> (i32, i32) {
    %c0_i32 = arith.constant 0 : i32
    %c0_i32_0 = arith.constant 0 : i32
    %c0_i32_1 = arith.constant 0 : i32
    return %c0_i32, %c0_i32_0 : i32, i32
  }
  func.func @transform_10(%arg0: i32, %arg1: i32) -> (i32, i32) {
    %c0_i32 = arith.constant 0 : i32
    %c0_i32_0 = arith.constant 0 : i32
    %c0_i32_1 = arith.constant 0 : i32
    return %c0_i32, %c0_i32_0 : i32, i32
  }
  func.func @transform_11(%arg0: i32, %arg1: i32) -> (i32, i32) {
    %c0_i32 = arith.constant 0 : i32
    %c0_i32_0 = arith.constant 0 : i32
    %c0_i32_1 = arith.constant 0 : i32
    return %c0_i32, %c0_i32_0 : i32, i32
  }
  func.func @transform_12(%arg0: i32, %arg1: i32) -> (i32, i32) {
    %c0_i32 = arith.constant 0 : i32
    %c0_i32_0 = arith.constant 0 : i32
    %c0_i32_1 = arith.constant 0 : i32
    return %c0_i32, %c0_i32_0 : i32, i32
  }
  func.func @transform_13(%arg0: i32, %arg1: i32) -> (i32, i32) {
    %c0_i32 = arith.constant 0 : i32
    %c0_i32_0 = arith.constant 0 : i32
    %c0_i32_1 = arith.constant 0 : i32
    return %c0_i32, %c0_i32_0 : i32, i32
  }
  func.func @transform_14(%arg0: i32, %arg1: i32) -> (i32, i32, i32) {
    %c0_i32 = arith.constant 0 : i32
    %c0_i32_0 = arith.constant 0 : i32
    return %arg0, %arg1, %c0_i32 : i32, i32, i32
  }
}

</mosaic_0001>

<llo_original>
// kernel: tpu_custom_call.1
$region0: #{tpu_custom_call.1}
  #allocation0 [shape = 'u32[]', space=smem, size = 0x4, offset = 0x4, fixed_abs, tag = 'smem constant byte address 0x4 - core index']
  #allocation1 [shape = 'u32[72,128]{1,0:T(1,128)}', space=vmem, size = 0x9000, scoped, tag = 'internal scratch']
  #allocation2 [shape = 'bf16[32,128]{1,0:T(8,128)(2,1)}', space=vmem, size = 0x2000, scoped, tag = 'scratch operand']
  #allocation3 [shape = 'bf16[32,128]{1,0:T(8,128)(2,1)}', space=vmem, size = 0x2000, scoped, tag = 'scratch operand']
  %s0 = inlined_call_operand.hbm [shape: f32[2,16,128], index: 0, kind: input, shape index: {}]
  %s1 = inlined_call_operand.hbm [shape: f32[2,32,128], index: 1, kind: input, shape index: {}]
  %s2 = inlined_call_operand.vmem [shape: f32[1,128], index: 2, kind: input, shape index: {}]
  %s3 = inlined_call_operand.vmem [shape: f32[1,128], index: 3, kind: input, shape index: {}]
  %s4 = inlined_call_operand.hbm [shape: bf16[128,128], index: 4, kind: input, shape index: {}]
  %s5 = inlined_call_operand.hbm [shape: bf16[128,256], index: 5, kind: input, shape index: {}]
  %s6 = inlined_call_operand.hbm [shape: bf16[128,128], index: 6, kind: input, shape index: {}]
  %s7 = inlined_call_operand.vmem [shape: f32[1,128], index: 7, kind: input, shape index: {}]
  %s8 = inlined_call_operand.hbm [shape: f32[1,128], index: 8, kind: input, shape index: {}]
  %s9 = inlined_call_operand.vmem [shape: f32[1,128], index: 9, kind: input, shape index: {}]
  %s10 = inlined_call_operand.hbm [shape: bf16[128,512], index: 10, kind: input, shape index: {}]
  %s11 = inlined_call_operand.vmem [shape: f32[1,512], index: 11, kind: input, shape index: {}]
  %s12 = inlined_call_operand.hbm [shape: bf16[512,128], index: 12, kind: input, shape index: {}]
  %s13 = inlined_call_operand.vmem [shape: f32[1,128], index: 13, kind: input, shape index: {}]
  %s14 = inlined_call_operand.hbm [shape: f32[2,16,128], index: 14, kind: output, shape index: {}]
  %s15 = sld [smem:[#allocation0]]
  $region125: #{tpu_custom_call.1} parent=0
    _
  %s17 = ssub.s32 1, %s15
  %s18 = scalar_select 0, %s17, %s15
  $region1: #{tpu_custom_call.1} parent=0
    #allocation4 [shape = 'u8[16384]{0}', space=vmem, size = 0x4000, scoped, tag = 'input window, operand 0']
    #allocation5 [shape = 's32[2]{0}', space=sflag, size = 0x8, scoped, tag = 'scoped memory for tpu_custom_call.1']
    #allocation6 [shape = 's32[2]{0}', space=sflag, size = 0x8, scoped, tag = 'scoped memory for tpu_custom_call.1']
    #allocation7 [shape = 'u8[32768]{0}', space=vmem, size = 0x8000, scoped, tag = 'input window, operand 1']
    #allocation8 [shape = 's32[2]{0}', space=sflag, size = 0x8, scoped, tag = 'scoped memory for tpu_custom_call.1']
    #allocation9 [shape = 'u8[32768]{0}', space=vmem, size = 0x8000, scoped, tag = 'input window, operand 4, single buffered']
    #allocation10 [shape = 'u8[65536]{0}', space=vmem, size = 0x10000, scoped, tag = 'input window, operand 5, single buffered']
    #allocation11 [shape = 's32[1]{0}', space=sflag, size = 0x4, scoped, tag = 'scoped memory for tpu_custom_call.1']
    #allocation12 [shape = 'u8[32768]{0}', space=vmem, size = 0x8000, scoped, tag = 'input window, operand 6, single buffered']
    #allocation13 [shape = 'u8[512]{0}', space=vmem, size = 0x400, scoped, tag = 'input window, operand 8, single buffered']
    #allocation14 [shape = 's32[1]{0}', space=sflag, size = 0x4, scoped, tag = 'scoped memory for tpu_custom_call.1']
    #allocation15 [shape = 'u8[131072]{0}', space=vmem, size = 0x20000, scoped, tag = 'input window, operand 10, single buffered']
    #allocation16 [shape = 'u8[131072]{0}', space=vmem, size = 0x20000, scoped, tag = 'input window, operand 12, single buffered']
    #allocation17 [shape = 's32[1]{0}', space=sflag, size = 0x4, scoped, tag = 'scoped memory for tpu_custom_call.1']
    #allocation18 [shape = 'u8[16384]{0}', space=vmem, size = 0x4000, scoped, tag = 'output window, operand 0']
    %19 = vsyncpa [#allocation5], 0
    %s20 = scalar_lea.sflag [#allocation5], 1
    %21 = vsyncpa %s20, 0
    %22 = vsyncpa [#allocation8], 0
    %s23 = scalar_lea.sflag [#allocation8], 1
    %24 = vsyncpa %s23, 0
    %25 = vsyncpa [#allocation11], 0
    %26 = vsyncpa [#allocation14], 0
    %27 = vsyncpa [#allocation17], 0
    %28 = vsyncpa [#allocation6], 0
    %s29 = scalar_lea.sflag [#allocation6], 1
    %30 = vsyncpa %s29, 0
    loop: start=0, step=1, limit=4
    $region2: #{tpu_custom_call.1} parent=1 // loop_pre_header
      _
    $region3: #{tpu_custom_call.1} parent=1 // loop_header
      %s32 = sphi 0, %s36
      %p33 = scmp.ge.s32.totalorder %s32, 4
      %s39 = sphi 0, %s51
      %s40 = sphi 0, %s47
      %s41 = sphi 0, %s39
      %s42 = sphi 0, %s40
      %s43 = sphi 0, %s41
      %s44 = sphi 0, %s42
      %s56 = sphi 0, %s58
      %s59 = sphi 0, %s56
      %s60 = sphi 0, %s59
      %s76 = sphi 0, %s60
      %s82 = sphi 0, %s84
      %s85 = sphi 0, %s82
      %s86 = sphi 0, %s85
      %s102 = sphi 0, %s86
      %s106 = sphi 0, %s106
      %s108 = sphi 0, %s106
      %s109 = sphi 0, %s108
      %s123 = sphi 0, %s109
      %s127 = sphi 0, %s127
      %s129 = sphi 0, %s127
      %s130 = sphi 0, %s129
      %s144 = sphi 0, %s130
      %s148 = sphi 0, %s148
      %s150 = sphi 0, %s148
      %s151 = sphi 0, %s150
      %s165 = sphi 0, %s151
      %s169 = sphi 0, %s169
      %s171 = sphi 0, %s169
      %s172 = sphi 0, %s171
      %s186 = sphi 0, %s172
      %s190 = sphi 0, %s190
      %s192 = sphi 0, %s190
      %s193 = sphi 0, %s192
      %s207 = sphi 0, %s193
      %s211 = sphi 0, %s211
      %s213 = sphi 0, %s211
      %s214 = sphi 0, %s213
      %s228 = sphi 0, %s214
      %s232 = sphi 0, %s232
      %s234 = sphi 0, %s232
      %s235 = sphi 0, %s234
      %s249 = sphi 0, %s235
      %s253 = sphi 0, %s253
      %s255 = sphi 0, %s253
      %s256 = sphi 0, %s255
      %s270 = sphi 0, %s256
      %s274 = sphi 0, %s274
      %s276 = sphi 0, %s274
      %s277 = sphi 0, %s276
      %s291 = sphi 0, %s277
      %s295 = sphi 0, %s295
      %s297 = sphi 0, %s295
      %s298 = sphi 0, %s297
      %s312 = sphi 0, %s298
      %s316 = sphi 0, %s316
      %s318 = sphi 0, %s316
      %s319 = sphi 0, %s318
      %s333 = sphi 0, %s319
      %s337 = sphi 0, %s337
      %s339 = sphi 0, %s337
      %s340 = sphi 0, %s339
      %s354 = sphi 0, %s340
      %s362 = sphi 0, %s364
      %s365 = sphi 0, %s362
      %s366 = sphi 0, %s365
      %s382 = sphi 0, %s366
    $region4: #{tpu_custom_call.1} parent=1 // loop_header_branch
      %35 = sbr.rel (%p33) target = $region8
    $region5: #{tpu_custom_call.1} parent=1 // loop_body
      %s37 = ssub.s32 %s32, 1
      %s38 = ssub.s32 %s32, 2
      %s45 = sadd.s32 1, %s40
      %p46 = scmp.ge.s32.totalorder %s45, 1
      %s47 = scalar_select %p46, 0, %s45
      %s48 = sadd.s32 1, %s39
      %s49 = scalar_select %p46, %s48, %s39
      %p50 = scmp.ge.s32.totalorder %s49, 2
      %s51 = scalar_select %p50, 0, %s49
      %s52 = ssub.s32 %s39, %s51
      %s53 = ssub.s32 %s40, %s47
      %s54 = sor.u32 %s52, %s53
      %p55 = scmp.eq.s32.totalorder %s54, 0
      %s57 = sadd.s32 %s56, 1
      %s58 = scalar_select %p55, %s56, %s57
      %p61 = pneg %p55
      %p62 = scmp.eq.s32.totalorder %s32, 1
      %p63 = por %p61, %p62
      %p64 = scmp.ne.s32.totalorder %s56, %s59
      %p65 = scmp.eq.s32.totalorder %s32, 0
      %p66 = por %p64, %p65
      %p67 = scmp.ne.s32.totalorder %s56, %s59
      %p68 = scmp.eq.s32.totalorder %s37, 1
      %p69 = por %p67, %p68
      %p70 = scmp.ne.s32.totalorder %s59, %s60
      %p71 = scmp.eq.s32.totalorder %s37, 0
      %p72 = por %p70, %p71
      %p73 = scmp.ne.s32.totalorder %s59, %s60
      %p74 = scmp.eq.s32.totalorder %s38, 1
      %p75 = por %p73, %p74
      %p77 = scmp.ne.s32.totalorder %s60, %s76
      %p78 = scmp.eq.s32.totalorder %s38, 0
      %p79 = por %p77, %p78
      %s80 = ssub.s32 %s39, %s51
      %p81 = scmp.eq.s32.totalorder %s80, 0
      %s83 = sadd.s32 %s82, 1
      %s84 = scalar_select %p81, %s82, %s83
      %p87 = pneg %p81
      %p88 = scmp.eq.s32.totalorder %s32, 1
      %p89 = por %p87, %p88
      %p90 = scmp.ne.s32.totalorder %s82, %s85
      %p91 = scmp.eq.s32.totalorder %s32, 0
      %p92 = por %p90, %p91
      %p93 = scmp.ne.s32.totalorder %s82, %s85
      %p94 = scmp.eq.s32.totalorder %s37, 1
      %p95 = por %p93, %p94
      %p96 = scmp.ne.s32.totalorder %s85, %s86
      %p97 = scmp.eq.s32.totalorder %s37, 0
      %p98 = por %p96, %p97
      %p99 = scmp.ne.s32.totalorder %s85, %s86
      %p100 = scmp.eq.s32.totalorder %s38, 1
      %p101 = por %p99, %p100
      %p103 = scmp.ne.s32.totalorder %s86, %s102
      %p104 = scmp.eq.s32.totalorder %s38, 0
      %p105 = por %p103, %p104
      %s107 = sadd.s32 %s106, 1
      %p110 = scmp.eq.s32.totalorder %s32, 1
      %p111 = scmp.ne.s32.totalorder %s106, %s108
      %p112 = scmp.eq.s32.totalorder %s32, 0
      %p113 = por %p111, %p112
      %p114 = scmp.ne.s32.totalorder %s106, %s108
      %p115 = scmp.eq.s32.totalorder %s37, 1
      %p116 = por %p114, %p115
      %p117 = scmp.ne.s32.totalorder %s108, %s109
      %p118 = scmp.eq.s32.totalorder %s37, 0
      %p119 = por %p117, %p118
      %p120 = scmp.ne.s32.totalorder %s108, %s109
      %p121 = scmp.eq.s32.totalorder %s38, 1
      %p122 = por %p120, %p121
      %p124 = scmp.ne.s32.totalorder %s109, %s123
      %p125 = scmp.eq.s32.totalorder %s38, 0
      %p126 = por %p124, %p125
      %s128 = sadd.s32 %s127, 1
      %p131 = scmp.eq.s32.totalorder %s32, 1
      %p132 = scmp.ne.s32.totalorder %s127, %s129
      %p133 = scmp.eq.s32.totalorder %s32, 0
      %p134 = por %p132, %p133
      %p135 = scmp.ne.s32.totalorder %s127, %s129
      %p136 = scmp.eq.s32.totalorder %s37, 1
      %p137 = por %p135, %p136
      %p138 = scmp.ne.s32.totalorder %s129, %s130
      %p139 = scmp.eq.s32.totalorder %s37, 0
      %p140 = por %p138, %p139
      %p141 = scmp.ne.s32.totalorder %s129, %s130
      %p142 = scmp.eq.s32.totalorder %s38, 1
      %p143 = por %p141, %p142
      %p145 = scmp.ne.s32.totalorder %s130, %s144
      %p146 = scmp.eq.s32.totalorder %s38, 0
      %p147 = por %p145, %p146
      %s149 = sadd.s32 %s148, 1
      %p152 = scmp.eq.s32.totalorder %s32, 1
      %p153 = scmp.ne.s32.totalorder %s148, %s150
      %p154 = scmp.eq.s32.totalorder %s32, 0
      %p155 = por %p153, %p154
      %p156 = scmp.ne.s32.totalorder %s148, %s150
      %p157 = scmp.eq.s32.totalorder %s37, 1
      %p158 = por %p156, %p157
      %p159 = scmp.ne.s32.totalorder %s150, %s151
      %p160 = scmp.eq.s32.totalorder %s37, 0
      %p161 = por %p159, %p160
      %p162 = scmp.ne.s32.totalorder %s150, %s151
      %p163 = scmp.eq.s32.totalorder %s38, 1
      %p164 = por %p162, %p163
      %p166 = scmp.ne.s32.totalorder %s151, %s165
      %p167 = scmp.eq.s32.totalorder %s38, 0
      %p168 = por %p166, %p167
      %s170 = sadd.s32 %s169, 1
      %p173 = scmp.eq.s32.totalorder %s32, 1
      %p174 = scmp.ne.s32.totalorder %s169, %s171
      %p175 = scmp.eq.s32.totalorder %s32, 0
      %p176 = por %p174, %p175
      %p177 = scmp.ne.s32.totalorder %s169, %s171
      %p178 = scmp.eq.s32.totalorder %s37, 1
      %p179 = por %p177, %p178
      %p180 = scmp.ne.s32.totalorder %s171, %s172
      %p181 = scmp.eq.s32.totalorder %s37, 0
      %p182 = por %p180, %p181
      %p183 = scmp.ne.s32.totalorder %s171, %s172
      %p184 = scmp.eq.s32.totalorder %s38, 1
      %p185 = por %p183, %p184
      %p187 = scmp.ne.s32.totalorder %s172, %s186
      %p188 = scmp.eq.s32.totalorder %s38, 0
      %p189 = por %p187, %p188
      %s191 = sadd.s32 %s190, 1
      %p194 = scmp.eq.s32.totalorder %s32, 1
      %p195 = scmp.ne.s32.totalorder %s190, %s192
      %p196 = scmp.eq.s32.totalorder %s32, 0
      %p197 = por %p195, %p196
      %p198 = scmp.ne.s32.totalorder %s190, %s192
      %p199 = scmp.eq.s32.totalorder %s37, 1
      %p200 = por %p198, %p199
      %p201 = scmp.ne.s32.totalorder %s192, %s193
      %p202 = scmp.eq.s32.totalorder %s37, 0
      %p203 = por %p201, %p202
      %p204 = scmp.ne.s32.totalorder %s192, %s193
      %p205 = scmp.eq.s32.totalorder %s38, 1
      %p206 = por %p204, %p205
      %p208 = scmp.ne.s32.totalorder %s193, %s207
      %p209 = scmp.eq.s32.totalorder %s38, 0
      %p210 = por %p208, %p209
      %s212 = sadd.s32 %s211, 1
      %p215 = scmp.eq.s32.totalorder %s32, 1
      %p216 = scmp.ne.s32.totalorder %s211, %s213
      %p217 = scmp.eq.s32.totalorder %s32, 0
      %p218 = por %p216, %p217
      %p219 = scmp.ne.s32.totalorder %s211, %s213
      %p220 = scmp.eq.s32.totalorder %s37, 1
      %p221 = por %p219, %p220
      %p222 = scmp.ne.s32.totalorder %s213, %s214
      %p223 = scmp.eq.s32.totalorder %s37, 0
      %p224 = por %p222, %p223
      %p225 = scmp.ne.s32.totalorder %s213, %s214
      %p226 = scmp.eq.s32.totalorder %s38, 1
      %p227 = por %p225, %p226
      %p229 = scmp.ne.s32.totalorder %s214, %s228
      %p230 = scmp.eq.s32.totalorder %s38, 0
      %p231 = por %p229, %p230
      %s233 = sadd.s32 %s232, 1
      %p236 = scmp.eq.s32.totalorder %s32, 1
      %p237 = scmp.ne.s32.totalorder %s232, %s234
      %p238 = scmp.eq.s32.totalorder %s32, 0
      %p239 = por %p237, %p238
      %p240 = scmp.ne.s32.totalorder %s232, %s234
      %p241 = scmp.eq.s32.totalorder %s37, 1
      %p242 = por %p240, %p241
      %p243 = scmp.ne.s32.totalorder %s234, %s235
      %p244 = scmp.eq.s32.totalorder %s37, 0
      %p245 = por %p243, %p244
      %p246 = scmp.ne.s32.totalorder %s234, %s235
      %p247 = scmp.eq.s32.totalorder %s38, 1
      %p248 = por %p246, %p247
      %p250 = scmp.ne.s32.totalorder %s235, %s249
      %p251 = scmp.eq.s32.totalorder %s38, 0
      %p252 = por %p250, %p251
      %s254 = sadd.s32 %s253, 1
      %p257 = scmp.eq.s32.totalorder %s32, 1
      %p258 = scmp.ne.s32.totalorder %s253, %s255
      %p259 = scmp.eq.s32.totalorder %s32, 0
      %p260 = por %p258, %p259
      %p261 = scmp.ne.s32.totalorder %s253, %s255
      %p262 = scmp.eq.s32.totalorder %s37, 1
      %p263 = por %p261, %p262
      %p264 = scmp.ne.s32.totalorder %s255, %s256
      %p265 = scmp.eq.s32.totalorder %s37, 0
      %p266 = por %p264, %p265
      %p267 = scmp.ne.s32.totalorder %s255, %s256
      %p268 = scmp.eq.s32.totalorder %s38, 1
      %p269 = por %p267, %p268
      %p271 = scmp.ne.s32.totalorder %s256, %s270
      %p272 = scmp.eq.s32.totalorder %s38, 0
      %p273 = por %p271, %p272
      %s275 = sadd.s32 %s274, 1
      %p278 = scmp.eq.s32.totalorder %s32, 1
      %p279 = scmp.ne.s32.totalorder %s274, %s276
      %p280 = scmp.eq.s32.totalorder %s32, 0
      %p281 = por %p279, %p280
      %p282 = scmp.ne.s32.totalorder %s274, %s276
      %p283 = scmp.eq.s32.totalorder %s37, 1
      %p284 = por %p282, %p283
      %p285 = scmp.ne.s32.totalorder %s276, %s277
      %p286 = scmp.eq.s32.totalorder %s37, 0
      %p287 = por %p285, %p286
      %p288 = scmp.ne.s32.totalorder %s276, %s277
      %p289 = scmp.eq.s32.totalorder %s38, 1
      %p290 = por %p288, %p289
      %p292 = scmp.ne.s32.totalorder %s277, %s291
      %p293 = scmp.eq.s32.totalorder %s38, 0
      %p294 = por %p292, %p293
      %s296 = sadd.s32 %s295, 1
      %p299 = scmp.eq.s32.totalorder %s32, 1
      %p300 = scmp.ne.s32.totalorder %s295, %s297
      %p301 = scmp.eq.s32.totalorder %s32, 0
      %p302 = por %p300, %p301
      %p303 = scmp.ne.s32.totalorder %s295, %s297
      %p304 = scmp.eq.s32.totalorder %s37, 1
      %p305 = por %p303, %p304
      %p306 = scmp.ne.s32.totalorder %s297, %s298
      %p307 = scmp.eq.s32.totalorder %s37, 0
      %p308 = por %p306, %p307
      %p309 = scmp.ne.s32.totalorder %s297, %s298
      %p310 = scmp.eq.s32.totalorder %s38, 1
      %p311 = por %p309, %p310
      %p313 = scmp.ne.s32.totalorder %s298, %s312
      %p314 = scmp.eq.s32.totalorder %s38, 0
      %p315 = por %p313, %p314
      %s317 = sadd.s32 %s316, 1
      %p320 = scmp.eq.s32.totalorder %s32, 1
      %p321 = scmp.ne.s32.totalorder %s316, %s318
      %p322 = scmp.eq.s32.totalorder %s32, 0
      %p323 = por %p321, %p322
      %p324 = scmp.ne.s32.totalorder %s316, %s318
      %p325 = scmp.eq.s32.totalorder %s37, 1
      %p326 = por %p324, %p325
      %p327 = scmp.ne.s32.totalorder %s318, %s319
      %p328 = scmp.eq.s32.totalorder %s37, 0
      %p329 = por %p327, %p328
      %p330 = scmp.ne.s32.totalorder %s318, %s319
      %p331 = scmp.eq.s32.totalorder %s38, 1
      %p332 = por %p330, %p331
      %p334 = scmp.ne.s32.totalorder %s319, %s333
      %p335 = scmp.eq.s32.totalorder %s38, 0
      %p336 = por %p334, %p335
      %s338 = sadd.s32 %s337, 1
      %p341 = scmp.eq.s32.totalorder %s32, 1
      %p342 = scmp.ne.s32.totalorder %s337, %s339
      %p343 = scmp.eq.s32.totalorder %s32, 0
      %p344 = por %p342, %p343
      %p345 = scmp.ne.s32.totalorder %s337, %s339
      %p346 = scmp.eq.s32.totalorder %s37, 1
      %p347 = por %p345, %p346
      %p348 = scmp.ne.s32.totalorder %s339, %s340
      %p349 = scmp.eq.s32.totalorder %s37, 0
      %p350 = por %p348, %p349
      %p351 = scmp.ne.s32.totalorder %s339, %s340
      %p352 = scmp.eq.s32.totalorder %s38, 1
      %p353 = por %p351, %p352
      %p355 = scmp.ne.s32.totalorder %s340, %s354
      %p356 = scmp.eq.s32.totalorder %s38, 0
      %p357 = por %p355, %p356
      %s358 = ssub.s32 %s39, %s51
      %s359 = ssub.s32 %s40, %s47
      %s360 = sor.u32 %s358, %s359
      %p361 = scmp.eq.s32.totalorder %s360, 0
      %s363 = sadd.s32 %s362, 1
      %s364 = scalar_select %p361, %s362, %s363
      %p367 = pneg %p361
      %p368 = scmp.eq.s32.totalorder %s32, 1
      %p369 = por %p367, %p368
      %p370 = scmp.ne.s32.totalorder %s362, %s365
      %p371 = scmp.eq.s32.totalorder %s32, 0
      %p372 = por %p370, %p371
      %p373 = scmp.ne.s32.totalorder %s362, %s365
      %p374 = scmp.eq.s32.totalorder %s37, 1
      %p375 = por %p373, %p374
      %p376 = scmp.ne.s32.totalorder %s365, %s366
      %p377 = scmp.eq.s32.totalorder %s37, 0
      %p378 = por %p376, %p377
      %p379 = scmp.ne.s32.totalorder %s365, %s366
      %p380 = scmp.eq.s32.totalorder %s38, 1
      %p381 = por %p379, %p380
      %p383 = scmp.ne.s32.totalorder %s366, %s382
      %p384 = scmp.eq.s32.totalorder %s38, 0
      %p385 = por %p383, %p384
      %p386 = scmp.le.s32.totalorder 1, %s32
      %p387 = scmp.lt.s32.totalorder %s32, 3
      %p388 = pnand %p386, %p387
      %p389 = pneg %p388
      // Predicated region
      $region9: #{tpu_custom_call.1} parent=5 // pred_check
        _
      $region10: #{tpu_custom_call.1} parent=5 // pred_check_branch
        %391 = sbr.rel (%p388) target = $region12
      $region11: #{tpu_custom_call.1} parent=5 // pred_region
        %s392 = ssub.s32 %s32, 1
        // Predicated region
        $region13: #{tpu_custom_call.1} parent=11 // pred_check
          %p393 = pneg %p119
        $region14: #{tpu_custom_call.1} parent=11 // pred_check_branch
          %395 = sbr.rel (%p393) target = $region16
        $region15: #{tpu_custom_call.1} parent=11 // pred_region
          _
        $region16: #{tpu_custom_call.1} parent=11 // pred_fallthru
          _
        // Predicated region
        $region17: #{tpu_custom_call.1} parent=11 // pred_check
          %p396 = pneg %p140
        $region18: #{tpu_custom_call.1} parent=11 // pred_check_branch
          %398 = sbr.rel (%p396) target = $region20
        $region19: #{tpu_custom_call.1} parent=11 // pred_region
          _
        $region20: #{tpu_custom_call.1} parent=11 // pred_fallthru
          _
        // Predicated region
        $region21: #{tpu_custom_call.1} parent=11 // pred_check
          %p399 = pneg %p161
        $region22: #{tpu_custom_call.1} parent=11 // pred_check_branch
          %401 = sbr.rel (%p399) target = $region24
        $region23: #{tpu_custom_call.1} parent=11 // pred_region
          %403 = vsyncadd [#allocation8], 0
          %s404 = sshll.u32 %s4, 4
          %s405 = int_to_ptr.hbm [resolvable:$true] %s404
          %s406 = sshll.u32 [#allocation9], 4
          %s407 = int_to_ptr.vmem [resolvable:$true] %s406
          %412 = dma.hbm_to_vmem [thread:$0]  %s405, 1024, %s407, [#allocation8], 64, 64, 4
        $region24: #{tpu_custom_call.1} parent=11 // pred_fallthru
          _
        // Predicated region
        $region25: #{tpu_custom_call.1} parent=11 // pred_check
          %p413 = pneg %p182
        $region26: #{tpu_custom_call.1} parent=11 // pred_check_branch
          %415 = sbr.rel (%p413) target = $region28
        $region27: #{tpu_custom_call.1} parent=11 // pred_region
          %417 = vsyncadd [#allocation11], 0
          %s418 = sshll.u32 %s5, 4
          %s419 = int_to_ptr.hbm [resolvable:$true] %s418
          %s420 = sshll.u32 [#allocation10], 4
          %s421 = int_to_ptr.vmem [resolvable:$true] %s420
          %426 = dma.hbm_to_vmem [thread:$0]  %s419, 2048, %s421, [#allocation11], 128, 128, 8
        $region28: #{tpu_custom_call.1} parent=11 // pred_fallthru
          _
        // Predicated region
        $region29: #{tpu_custom_call.1} parent=11 // pred_check
          %p427 = pneg %p203
        $region30: #{tpu_custom_call.1} parent=11 // pred_check_branch
          %429 = sbr.rel (%p427) target = $region32
        $region31: #{tpu_custom_call.1} parent=11 // pred_region
          %431 = vsyncadd [#allocation11], 0
          %s432 = sshll.u32 %s6, 4
          %s433 = int_to_ptr.hbm [resolvable:$true] %s432
          %s434 = sshll.u32 [#allocation12], 4
          %s435 = int_to_ptr.vmem [resolvable:$true] %s434
          %440 = dma.hbm_to_vmem [thread:$0]  %s433, 1024, %s435, [#allocation11], 64, 64, 4
        $region32: #{tpu_custom_call.1} parent=11 // pred_fallthru
          _
        // Predicated region
        $region33: #{tpu_custom_call.1} parent=11 // pred_check
          %p441 = pneg %p224
        $region34: #{tpu_custom_call.1} parent=11 // pred_check_branch
          %443 = sbr.rel (%p441) target = $region36
        $region35: #{tpu_custom_call.1} parent=11 // pred_region
          _
        $region36: #{tpu_custom_call.1} parent=11 // pred_fallthru
          _
        // Predicated region
        $region37: #{tpu_custom_call.1} parent=11 // pred_check
          %p444 = pneg %p245
        $region38: #{tpu_custom_call.1} parent=11 // pred_check_branch
          %446 = sbr.rel (%p444) target = $region40
        $region39: #{tpu_custom_call.1} parent=11 // pred_region
          %448 = vsyncadd [#allocation14], 0
          %s450 = sshll.u32 %s8, 4
          %s451 = int_to_ptr.hbm [resolvable:$true] %s450
          %s452 = sshll.u32 [#allocation13], 4
          %s453 = int_to_ptr.vmem [resolvable:$true] %s452
          %455 = dma.hbm_to_vmem [thread:$0]  %s451, 16, %s453, [#allocation14]
        $region40: #{tpu_custom_call.1} parent=11 // pred_fallthru
          _
        // Predicated region
        $region41: #{tpu_custom_call.1} parent=11 // pred_check
          %p456 = pneg %p266
        $region42: #{tpu_custom_call.1} parent=11 // pred_check_branch
          %458 = sbr.rel (%p456) target = $region44
        $region43: #{tpu_custom_call.1} parent=11 // pred_region
          _
        $region44: #{tpu_custom_call.1} parent=11 // pred_fallthru
          _
        // Predicated region
        $region45: #{tpu_custom_call.1} parent=11 // pred_check
          %p459 = pneg %p287
        $region46: #{tpu_custom_call.1} parent=11 // pred_check_branch
          %461 = sbr.rel (%p459) target = $region48
        $region47: #{tpu_custom_call.1} parent=11 // pred_region
          %463 = vsyncadd [#allocation14], 0
          %s464 = sshll.u32 %s10, 4
          %s465 = int_to_ptr.hbm [resolvable:$true] %s464
          %s466 = sshll.u32 [#allocation15], 4
          %s467 = int_to_ptr.vmem [resolvable:$true] %s466
          %472 = dma.hbm_to_vmem [thread:$0]  %s465, 4096, %s467, [#allocation14], 256, 256, 16
        $region48: #{tpu_custom_call.1} parent=11 // pred_fallthru
          _
        // Predicated region
        $region49: #{tpu_custom_call.1} parent=11 // pred_check
          %p473 = pneg %p308
        $region50: #{tpu_custom_call.1} parent=11 // pred_check_branch
          %475 = sbr.rel (%p473) target = $region52
        $region51: #{tpu_custom_call.1} parent=11 // pred_region
          _
        $region52: #{tpu_custom_call.1} parent=11 // pred_fallthru
          _
        // Predicated region
        $region53: #{tpu_custom_call.1} parent=11 // pred_check
          %p476 = pneg %p329
        $region54: #{tpu_custom_call.1} parent=11 // pred_check_branch
          %478 = sbr.rel (%p476) target = $region56
        $region55: #{tpu_custom_call.1} parent=11 // pred_region
          %480 = vsyncadd [#allocation17], 0
          %s481 = sshll.u32 %s12, 4
          %s482 = int_to_ptr.hbm [resolvable:$true] %s481
          %s483 = sshll.u32 [#allocation16], 4
          %s484 = int_to_ptr.vmem [resolvable:$true] %s483
          %489 = dma.hbm_to_vmem [thread:$0]  %s482, 4096, %s484, [#allocation17], 64, 64, 4
        $region56: #{tpu_custom_call.1} parent=11 // pred_fallthru
          _
        // Predicated region
        $region57: #{tpu_custom_call.1} parent=11 // pred_check
          %p490 = pneg %p350
        $region58: #{tpu_custom_call.1} parent=11 // pred_check_branch
          %492 = sbr.rel (%p490) target = $region60
        $region59: #{tpu_custom_call.1} parent=11 // pred_region
          _
        $region60: #{tpu_custom_call.1} parent=11 // pred_fallthru
          _
      $region12: #{tpu_custom_call.1} parent=5 // pred_fallthru
        _
      %p493 = scmp.lt.s32.totalorder %s32, 2
      // Predicated region
      $region61: #{tpu_custom_call.1} parent=5 // pred_check
        %p494 = pneg %p493
      $region62: #{tpu_custom_call.1} parent=5 // pred_check_branch
        %496 = sbr.rel (%p494) target = $region64
      $region63: #{tpu_custom_call.1} parent=5 // pred_region
        // Predicated region
        $region65: #{tpu_custom_call.1} parent=63 // pred_check
          %p497 = pneg %p66
        $region66: #{tpu_custom_call.1} parent=63 // pred_check_branch
          %499 = sbr.rel (%p497) target = $region68
        $region67: #{tpu_custom_call.1} parent=63 // pred_region
          %s500 = sand.u32 %s56, 1
          %s501 = scalar_lea.sflag [#allocation5], %s500
          %s502 = sand.u32 %s56, 1
          %s503 = smul.addr %s502, 16
          %s504 = scalar_lea.vmem [#allocation4], %s503
          %s505 = smul.u32 2, %s40
          %507 = vsyncadd %s501, 0
          %s508 = smul.addr %s39, 2
          %s509 = sadd.s32 %s505, %s508
          %s510 = smul.addr %s509, 8
          %s511 = scalar_lea.hbm %s0, %s510
          %s512 = sshll.u32 %s511, 4
          %s513 = int_to_ptr.hbm [resolvable:$true] %s512
          %s514 = sshll.u32 %s504, 4
          %s515 = int_to_ptr.vmem [resolvable:$true] %s514
          %520 = dma.hbm_to_vmem [thread:$0]  %s513, 256, %s515, %s501, 128, 128, 8
        $region68: #{tpu_custom_call.1} parent=63 // pred_fallthru
          _
        // Predicated region
        $region69: #{tpu_custom_call.1} parent=63 // pred_check
          %p521 = pneg %p92
        $region70: #{tpu_custom_call.1} parent=63 // pred_check_branch
          %523 = sbr.rel (%p521) target = $region72
        $region71: #{tpu_custom_call.1} parent=63 // pred_region
          %s524 = sand.u32 %s32, 1
          %s525 = scalar_lea.sflag [#allocation8], %s524
          %s526 = sand.u32 %s82, 1
          %s527 = smul.addr %s526, 32
          %s528 = scalar_lea.vmem [#allocation7], %s527
          %530 = vsyncadd %s525, 0
          %s531 = smul.addr %s39, 4
          %s532 = smul.addr %s531, 8
          %s533 = scalar_lea.hbm %s1, %s532
          %s534 = sshll.u32 %s533, 4
          %s535 = int_to_ptr.hbm [resolvable:$true] %s534
          %s536 = sshll.u32 %s528, 4
          %s537 = int_to_ptr.vmem [resolvable:$true] %s536
          %542 = dma.hbm_to_vmem [thread:$0]  %s535, 512, %s537, %s525, 128, 128, 8
        $region72: #{tpu_custom_call.1} parent=63 // pred_fallthru
          _
      $region64: #{tpu_custom_call.1} parent=5 // pred_fallthru
        _
      %p543 = scmp.le.s32.totalorder 1, %s32
      %p544 = scmp.lt.s32.totalorder %s32, 3
      %p545 = pnand %p543, %p544
      %p546 = pneg %p545
      // Predicated region
      $region73: #{tpu_custom_call.1} parent=5 // pred_check
        _
      $region74: #{tpu_custom_call.1} parent=5 // pred_check_branch
        %548 = sbr.rel (%p545) target = $region76
      $region75: #{tpu_custom_call.1} parent=5 // pred_region
        %s549 = ssub.s32 %s32, 1
        %s550 = sand.u32 %s59, 1
        %s551 = scalar_lea.sflag [#allocation5], %s550
        %s552 = sand.u32 %s59, 1
        %s553 = smul.addr %s552, 16
        %s554 = scalar_lea.vmem [#allocation4], %s553
        // Predicated region
        $region77: #{tpu_custom_call.1} parent=75 // pred_check
          %p555 = pneg %p72
        $region78: #{tpu_custom_call.1} parent=75 // pred_check_branch
          %557 = sbr.rel (%p555) target = $region80
        $region79: #{tpu_custom_call.1} parent=75 // pred_region
          %559 = dma.done %s551, 256
        $region80: #{tpu_custom_call.1} parent=75 // pred_fallthru
          _
        %s560 = sand.u32 %s37, 1
        %s561 = scalar_lea.sflag [#allocation8], %s560
        %s562 = sand.u32 %s85, 1
        %s563 = smul.addr %s562, 32
        %s564 = scalar_lea.vmem [#allocation7], %s563
        // Predicated region
        $region81: #{tpu_custom_call.1} parent=75 // pred_check
          %p565 = pneg %p98
        $region82: #{tpu_custom_call.1} parent=75 // pred_check_branch
          %567 = sbr.rel (%p565) target = $region84
        $region83: #{tpu_custom_call.1} parent=75 // pred_region
          %569 = dma.done %s561, 512
        $region84: #{tpu_custom_call.1} parent=75 // pred_fallthru
          _
        // Predicated region
        $region85: #{tpu_custom_call.1} parent=75 // pred_check
          %p570 = pneg %p161
        $region86: #{tpu_custom_call.1} parent=75 // pred_check_branch
          %572 = sbr.rel (%p570) target = $region88
        $region87: #{tpu_custom_call.1} parent=75 // pred_region
          %574 = dma.done [#allocation8], 1024
        $region88: #{tpu_custom_call.1} parent=75 // pred_fallthru
          _
        // Predicated region
        $region89: #{tpu_custom_call.1} parent=75 // pred_check
          %p575 = pneg %p182
        $region90: #{tpu_custom_call.1} parent=75 // pred_check_branch
          %577 = sbr.rel (%p575) target = $region92
        $region91: #{tpu_custom_call.1} parent=75 // pred_region
          %579 = dma.done [#allocation11], 2048
        $region92: #{tpu_custom_call.1} parent=75 // pred_fallthru
          _
        // Predicated region
        $region93: #{tpu_custom_call.1} parent=75 // pred_check
          %p580 = pneg %p203
        $region94: #{tpu_custom_call.1} parent=75 // pred_check_branch
          %582 = sbr.rel (%p580) target = $region96
        $region95: #{tpu_custom_call.1} parent=75 // pred_region
          %584 = dma.done [#allocation11], 1024
        $region96: #{tpu_custom_call.1} parent=75 // pred_fallthru
          _
        // Predicated region
        $region97: #{tpu_custom_call.1} parent=75 // pred_check
          %p585 = pneg %p245
        $region98: #{tpu_custom_call.1} parent=75 // pred_check_branch
          %587 = sbr.rel (%p585) target = $region100
        $region99: #{tpu_custom_call.1} parent=75 // pred_region
          %589 = dma.done [#allocation14], 16
        $region100: #{tpu_custom_call.1} parent=75 // pred_fallthru
          _
        // Predicated region
        $region101: #{tpu_custom_call.1} parent=75 // pred_check
          %p590 = pneg %p287
        $region102: #{tpu_custom_call.1} parent=75 // pred_check_branch
          %592 = sbr.rel (%p590) target = $region104
        $region103: #{tpu_custom_call.1} parent=75 // pred_region
          %594 = dma.done [#allocation14], 4096
        $region104: #{tpu_custom_call.1} parent=75 // pred_fallthru
          _
        // Predicated region
        $region105: #{tpu_custom_call.1} parent=75 // pred_check
          %p595 = pneg %p329
        $region106: #{tpu_custom_call.1} parent=75 // pred_check_branch
          %597 = sbr.rel (%p595) target = $region108
        $region107: #{tpu_custom_call.1} parent=75 // pred_region
          %599 = dma.done [#allocation17], 4096
        $region108: #{tpu_custom_call.1} parent=75 // pred_fallthru
          _
        %s600 = sand.u32 %s59, 1
        %s601 = scalar_lea.sflag [#allocation5], %s600
        %s602 = sand.u32 %s59, 1
        %s603 = smul.addr %s602, 16
        %s604 = scalar_lea.vmem [#allocation4], %s603
        %p605 = pneg %p72
        %p606 = pneg %p69
        %s607 = sand.u32 %s37, 1
        %s608 = scalar_lea.sflag [#allocation8], %s607
        %s609 = sand.u32 %s85, 1
        %s610 = smul.addr %s609, 32
        %s611 = scalar_lea.vmem [#allocation7], %s610
        %p612 = pneg %p98
        %p613 = pneg %p95
        %p614 = pneg %p119
        %p615 = pneg %p116
        %p616 = pneg %p140
        %p617 = pneg %p137
        %p618 = pneg %p161
        %p619 = pneg %p158
        %p620 = pneg %p182
        %p621 = pneg %p179
        %p622 = pneg %p203
        %p623 = pneg %p200
        %p624 = pneg %p224
        %p625 = pneg %p221
        %p626 = pneg %p245
        %p627 = pneg %p242
        %p628 = pneg %p266
        %p629 = pneg %p263
        %p630 = pneg %p287
        %p631 = pneg %p284
        %p632 = pneg %p308
        %p633 = pneg %p305
        %p634 = pneg %p329
        %p635 = pneg %p326
        %p636 = pneg %p350
        %p637 = pneg %p347
        %p638 = pneg %p378
        %p639 = pneg %p375
        %s640 = sand.u32 %s365, 1
        %s641 = scalar_lea.sflag [#allocation6], %s640
        %s642 = sand.u32 %s365, 1
        %s643 = smul.addr %s642, 16
        %s644 = scalar_lea.vmem [#allocation18], %s643
        %s645 = smul.u32 2, %s42
        %s646 = smul.u32 2, %s42
        %p648 = scmp.eq.s32.totalorder %s42, 0
        // Predicated region
        $region109: #{tpu_custom_call.1} parent=75 // pred_check
          %p649 = pneg %p648
        $region110: #{tpu_custom_call.1} parent=75 // pred_check_branch
          %651 = sbr.rel (%p649) target = $region112
        $region111: #{tpu_custom_call.1} parent=75 // pred_region
          %v652 = vld [vmem:[%s564] sm:$0xff]
          %v653 = vld [vmem:[%s564 + $0x8] sm:$0xff]
          %v654 = vld [vmem:[%s564 + $0x10] sm:$0xff]
          %v655 = vld [vmem:[%s564 + $0x18] sm:$0xff]
          %v656 = vld [vmem:[%s2] sm:$0x1]
          %v657 = vld [vmem:[%s3] sm:$0x1]
          %658 = vadd.xlane.f32.xlu0 %v652
          %v659 = vpop.xlane.xlu0 %658
          %660 = vadd.xlane.f32.xlu0 %v653
          %v661 = vpop.xlane.xlu0 %660
          %662 = vadd.xlane.f32.xlu0 %v654
          %v663 = vpop.xlane.xlu0 %662
          %664 = vadd.xlane.f32.xlu0 %v655
          %v665 = vpop.xlane.xlu0 %664
          %v666 = vrcp.pop 128.0
          %v667 = vmul.f32 128.0, %v666
          %v668 = vsub.f32 1.0, %v667
          %v669 = vmul.f32 %v666, %v668
          %v670 = vadd.f32 %v666, %v669
          %vm671 = vweird.f32 %v666
          %v672 = vsel %vm671, %v666, %v670
          %v673 = vmul.f32 %v659, %v672
          %v674 = vmul.f32 %v661, %v672
          %v675 = vmul.f32 %v663, %v672
          %v676 = vmul.f32 %v665, %v672
          %v677 = vsub.f32 %v652, %v673
          %v678 = vsub.f32 %v653, %v674
          %v679 = vsub.f32 %v654, %v675
          %v680 = vsub.f32 %v655, %v676
          %v681 = vmul.f32 %v677, %v677
          %v682 = vmul.f32 %v678, %v678
          %v683 = vmul.f32 %v679, %v679
          %v684 = vmul.f32 %v680, %v680
          %685 = vadd.xlane.f32.xlu0 %v681
          %v686 = vpop.xlane.xlu0 %685
          %687 = vadd.xlane.f32.xlu0 %v682
          %v688 = vpop.xlane.xlu0 %687
          %689 = vadd.xlane.f32.xlu0 %v683
          %v690 = vpop.xlane.xlu0 %689
          %691 = vadd.xlane.f32.xlu0 %v684
          %v692 = vpop.xlane.xlu0 %691
          %v693 = vmul.f32 %v686, %v672
          %v694 = vmul.f32 %v688, %v672
          %v695 = vmul.f32 %v690, %v672
          %v696 = vmul.f32 %v692, %v672
          %v697 = vadd.f32 %v693, 1e-05
          %v698 = vadd.f32 %v694, 1e-05
          %v699 = vadd.f32 %v695, 1e-05
          %v700 = vadd.f32 %v696, 1e-05
          %v701 = vrsqrt.pop %v697
          %v702 = vmul.f32 %v701, %v697
          %v703 = vmul.f32 %v702, %v701
          %v704 = vmul.f32 0.5, %v703
          %v705 = vsub.f32 1.5, %v704
          %v706 = vmul.f32 %v701, %v705
          %vm707 = vweird.f32 %v697
          %vm708 = vweird.f32 %v701
          %vm709 = vmor %vm707, %vm708
          %v710 = vsel %vm709, %v701, %v706
          %v711 = vrsqrt.pop %v698
          %v712 = vmul.f32 %v711, %v698
          %v713 = vmul.f32 %v712, %v711
          %v714 = vmul.f32 0.5, %v713
          %v715 = vsub.f32 1.5, %v714
          %v716 = vmul.f32 %v711, %v715
          %vm717 = vweird.f32 %v698
          %vm718 = vweird.f32 %v711
          %vm719 = vmor %vm717, %vm718
          %v720 = vsel %vm719, %v711, %v716
          %v721 = vrsqrt.pop %v699
          %v722 = vmul.f32 %v721, %v699
          %v723 = vmul.f32 %v722, %v721
          %v724 = vmul.f32 0.5, %v723
          %v725 = vsub.f32 1.5, %v724
          %v726 = vmul.f32 %v721, %v725
          %vm727 = vweird.f32 %v699
          %vm728 = vweird.f32 %v721
          %vm729 = vmor %vm727, %vm728
          %v730 = vsel %vm729, %v721, %v726
          %v731 = vrsqrt.pop %v700
          %v732 = vmul.f32 %v731, %v700
          %v733 = vmul.f32 %v732, %v731
          %v734 = vmul.f32 0.5, %v733
          %v735 = vsub.f32 1.5, %v734
          %v736 = vmul.f32 %v731, %v735
          %vm737 = vweird.f32 %v700
          %vm738 = vweird.f32 %v731
          %vm739 = vmor %vm737, %vm738
          %v740 = vsel %vm739, %v731, %v736
          %v741 = vmul.f32 %v677, %v710
          %v742 = vmul.f32 %v678, %v720
          %v743 = vmul.f32 %v679, %v730
          %v744 = vmul.f32 %v680, %v740
          %v746 = vperm.slane %v656, 0
          %v748 = vmul.f32 %v741, %v746
          %v749 = vmul.f32 %v742, %v746
          %v750 = vmul.f32 %v743, %v746
          %v751 = vmul.f32 %v744, %v746
          %v753 = vperm.slane %v657, 0
          %v755 = vadd.f32 %v748, %v753
          %v756 = vadd.f32 %v749, %v753
          %v757 = vadd.f32 %v750, %v753
          %v758 = vadd.f32 %v751, %v753
          %v759 = vpack.c.bf16 %v756, %v755
          %v760 = vpack.c.bf16 %v758, %v757
          %v761 = vld [vmem:[#allocation10] sm:$0xff]
          %v762 = vld [vmem:[#allocation10 + $0x8] sm:$0xff]
          %v763 = vld [vmem:[#allocation10 + $0x10] sm:$0xff]
          %v764 = vld [vmem:[#allocation10 + $0x18] sm:$0xff]
          %v765 = vld [vmem:[#allocation10 + $0x20] sm:$0xff]
          %v766 = vld [vmem:[#allocation10 + $0x28] sm:$0xff]
          %v767 = vld [vmem:[#allocation10 + $0x30] sm:$0xff]
          %v768 = vld [vmem:[#allocation10 + $0x38] sm:$0xff]
          %v769 = vld [vmem:[#allocation10 + $0x40] sm:$0xff]
          %v770 = vld [vmem:[#allocation10 + $0x48] sm:$0xff]
          %v771 = vld [vmem:[#allocation10 + $0x50] sm:$0xff]
          %v772 = vld [vmem:[#allocation10 + $0x58] sm:$0xff]
          %v773 = vld [vmem:[#allocation10 + $0x60] sm:$0xff]
          %v774 = vld [vmem:[#allocation10 + $0x68] sm:$0xff]
          %v775 = vld [vmem:[#allocation10 + $0x70] sm:$0xff]
          %v776 = vld [vmem:[#allocation10 + $0x78] sm:$0xff]
          %v793 = vunpack.c.l.b16 %v761
          %v794 = vunpack.c.h.b16 %v761
          %v795 = vunpack.c.l.b16 %v762
          %v796 = vunpack.c.h.b16 %v762
          %v797 = vunpack.c.l.b16 %v763
          %v798 = vunpack.c.h.b16 %v763
          %v799 = vunpack.c.l.b16 %v764
          %v800 = vunpack.c.h.b16 %v764
          %v801 = vunpack.c.l.b16 %v765
          %v802 = vunpack.c.h.b16 %v765
          %v803 = vunpack.c.l.b16 %v766
          %v804 = vunpack.c.h.b16 %v766
          %v805 = vunpack.c.l.b16 %v767
          %v806 = vunpack.c.h.b16 %v767
          %v807 = vunpack.c.l.b16 %v768
          %v808 = vunpack.c.h.b16 %v768
          %v809 = vunpack.c.l.b16 %v769
          %v810 = vunpack.c.h.b16 %v769
          %v811 = vunpack.c.l.b16 %v770
          %v812 = vunpack.c.h.b16 %v770
          %v813 = vunpack.c.l.b16 %v771
          %v814 = vunpack.c.h.b16 %v771
          %v815 = vunpack.c.l.b16 %v772
          %v816 = vunpack.c.h.b16 %v772
          %v817 = vunpack.c.l.b16 %v773
          %v818 = vunpack.c.h.b16 %v773
          %v819 = vunpack.c.l.b16 %v774
          %v820 = vunpack.c.h.b16 %v774
          %v821 = vunpack.c.l.b16 %v775
          %v822 = vunpack.c.h.b16 %v775
          %v823 = vunpack.c.l.b16 %v776
          %v824 = vunpack.c.h.b16 %v776
          %v825 = vpack.c.b16 %v795, %v793
          %v826 = vpack.c.b16 %v796, %v794
          %v827 = vpack.c.b16 %v799, %v797
          %v828 = vpack.c.b16 %v800, %v798
          %v829 = vpack.c.b16 %v803, %v801
          %v830 = vpack.c.b16 %v804, %v802
          %v831 = vpack.c.b16 %v807, %v805
          %v832 = vpack.c.b16 %v808, %v806
          %v833 = vpack.c.b16 %v811, %v809
          %v834 = vpack.c.b16 %v812, %v810
          %v835 = vpack.c.b16 %v815, %v813
          %v836 = vpack.c.b16 %v816, %v814
          %v837 = vpack.c.b16 %v819, %v817
          %v838 = vpack.c.b16 %v820, %v818
          %v839 = vpack.c.b16 %v823, %v821
          %v840 = vpack.c.b16 %v824, %v822
          %857 = vmatpush.bf16.msra.mxu0 %v839
          %858 = vmatpush.bf16.msra.mxu0 %v837
          %859 = vmatpush.bf16.msra.mxu0 %v835
          %860 = vmatpush.bf16.msra.mxu0 %v833
          %861 = vmatpush.bf16.msra.mxu0 %v831
          %862 = vmatpush.bf16.msra.mxu0 %v829
          %863 = vmatpush.bf16.msra.mxu0 %v827
          %864 = vmatpush.bf16.msra.mxu0 %v825
          %865 = vmatmul.bf16.gmra.mxu0 %v759
          %v866 = vpop.f32.mrf.mxu0
          %v867 = vadd.f32 0.0, %v866
          %v868 = vpop.f32.mrf.mxu0
          %v869 = vadd.f32 0.0, %v868
          %870 = vmatmul.bf16.gmra.mxu0 %v760
          %v871 = vpop.f32.mrf.mxu0
          %v872 = vadd.f32 0.0, %v871
          %v873 = vpop.f32.mrf.mxu0
          %v874 = vadd.f32 0.0, %v873
          %875 = vdwg.mxu0
          %876 = vmatpush.bf16.msra.mxu0 %v840
          %877 = vmatpush.bf16.msra.mxu0 %v838
          %878 = vmatpush.bf16.msra.mxu0 %v836
          %879 = vmatpush.bf16.msra.mxu0 %v834
          %880 = vmatpush.bf16.msra.mxu0 %v832
          %881 = vmatpush.bf16.msra.mxu0 %v830
          %882 = vmatpush.bf16.msra.mxu0 %v828
          %883 = vmatpush.bf16.msra.mxu0 %v826
          %884 = vmatmul.bf16.gmra.mxu0 %v759
          %v885 = vpop.f32.mrf.mxu0
          %v886 = vadd.f32 0.0, %v885
          %v887 = vpop.f32.mrf.mxu0
          %v888 = vadd.f32 0.0, %v887
          %889 = vmatmul.bf16.gmra.mxu0 %v760
          %v890 = vpop.f32.mrf.mxu0
          %v891 = vadd.f32 0.0, %v890
          %v892 = vpop.f32.mrf.mxu0
          %v893 = vadd.f32 0.0, %v892
          %894 = vdwg.mxu0
          %v895 = vpack.c.bf16 %v867, %v867
          %v896 = vpack.c.bf16 %v869, %v869
          %v897 = vpack.c.bf16 %v872, %v872
          %v898 = vpack.c.bf16 %v874, %v874
          %899 = vst [vmem:[#allocation2] sm:$0xf] %v895
          %900 = vst [vmem:[#allocation2 + $0x4] sm:$0xf] %v896
          %901 = vst [vmem:[#allocation2 + $0x8] sm:$0xf] %v897
          %902 = vst [vmem:[#allocation2 + $0xc] sm:$0xf] %v898
          %v903 = vpack.c.bf16 %v886, %v886
          %v904 = vpack.c.bf16 %v888, %v888
          %v905 = vpack.c.bf16 %v891, %v891
          %v906 = vpack.c.bf16 %v893, %v893
          %907 = vst [vmem:[#allocation3] sm:$0xf] %v903
          %908 = vst [vmem:[#allocation3 + $0x4] sm:$0xf] %v904
          %909 = vst [vmem:[#allocation3 + $0x8] sm:$0xf] %v905
          %910 = vst [vmem:[#allocation3 + $0xc] sm:$0xf] %v906
        $region112: #{tpu_custom_call.1} parent=75 // pred_fallthru
          _
        %v911 = vld [vmem:[%s554] sm:$0xff]
        %v912 = vld [vmem:[%s554 + $0x8] sm:$0xff]
        %v913 = vpack.c.bf16 %v912, %v911
        %v914 = vld [vmem:[#allocation9] sm:$0xf]
        %v915 = vld [vmem:[#allocation9 + $0x4] sm:$0xf]
        %v916 = vld [vmem:[#allocation9 + $0x8] sm:$0xf]
        %v917 = vld [vmem:[#allocation9 + $0xc] sm:$0xf]
        %v918 = vld [vmem:[#allocation9 + $0x10] sm:$0xf]
        %v919 = vld [vmem:[#allocation9 + $0x14] sm:$0xf]
        %v920 = vld [vmem:[#allocation9 + $0x18] sm:$0xf]
        %v921 = vld [vmem:[#allocation9 + $0x1c] sm:$0xf]
        %v922 = vld [vmem:[#allocation9 + $0x20] sm:$0xf]
        %v923 = vld [vmem:[#allocation9 + $0x24] sm:$0xf]
        %v924 = vld [vmem:[#allocation9 + $0x28] sm:$0xf]
        %v925 = vld [vmem:[#allocation9 + $0x2c] sm:$0xf]
        %v926 = vld [vmem:[#allocation9 + $0x30] sm:$0xf]
        %v927 = vld [vmem:[#allocation9 + $0x34] sm:$0xf]
        %v928 = vld [vmem:[#allocation9 + $0x38] sm:$0xf]
        %v929 = vld [vmem:[#allocation9 + $0x3c] sm:$0xf]
        %v946 = vunpack.c.l.b16 %v914
        %v947 = vunpack.c.l.b16 %v915
        %v948 = vunpack.c.l.b16 %v916
        %v949 = vunpack.c.l.b16 %v917
        %v950 = vunpack.c.l.b16 %v918
        %v951 = vunpack.c.l.b16 %v919
        %v952 = vunpack.c.l.b16 %v920
        %v953 = vunpack.c.l.b16 %v921
        %v954 = vunpack.c.l.b16 %v922
        %v955 = vunpack.c.l.b16 %v923
        %v956 = vunpack.c.l.b16 %v924
        %v957 = vunpack.c.l.b16 %v925
        %v958 = vunpack.c.l.b16 %v926
        %v959 = vunpack.c.l.b16 %v927
        %v960 = vunpack.c.l.b16 %v928
        %v961 = vunpack.c.l.b16 %v929
        %v962 = vpack.c.b16 %v947, %v946
        %v963 = vpack.c.b16 %v949, %v948
        %v964 = vpack.c.b16 %v951, %v950
        %v965 = vpack.c.b16 %v953, %v952
        %v966 = vpack.c.b16 %v955, %v954
        %v967 = vpack.c.b16 %v957, %v956
        %v968 = vpack.c.b16 %v959, %v958
        %v969 = vpack.c.b16 %v961, %v960
        %978 = vmatpush.bf16.msra.mxu0 %v969
        %979 = vmatpush.bf16.msra.mxu0 %v968
        %980 = vmatpush.bf16.msra.mxu0 %v967
        %981 = vmatpush.bf16.msra.mxu0 %v966
        %982 = vmatpush.bf16.msra.mxu0 %v965
        %983 = vmatpush.bf16.msra.mxu0 %v964
        %984 = vmatpush.bf16.msra.mxu0 %v963
        %985 = vmatpush.bf16.msra.mxu0 %v962
        %986 = vmatmul.bf16.gmra.mxu0 %v913
        %v987 = vpop.f32.mrf.mxu0
        %v988 = vadd.f32 0.0, %v987
        %v989 = vpop.f32.mrf.mxu0
        %v990 = vadd.f32 0.0, %v989
        %991 = vdwg.mxu0
        %v992 = vld [vmem:[#allocation2] sm:$0xf]
        %v993 = vld [vmem:[#allocation2 + $0x4] sm:$0xf]
        %v994 = vld [vmem:[#allocation2 + $0x8] sm:$0xf]
        %v995 = vld [vmem:[#allocation2 + $0xc] sm:$0xf]
        %v996 = vld [vmem:[#allocation3] sm:$0xf]
        %v997 = vld [vmem:[#allocation3 + $0x4] sm:$0xf]
        %v998 = vld [vmem:[#allocation3 + $0x8] sm:$0xf]
        %v999 = vld [vmem:[#allocation3 + $0xc] sm:$0xf]
        %v1000 = vpack.c.bf16 %v990, %v988
        %v1005 = vunpack.c.l.b16 %v992
        %v1006 = vunpack.c.l.b16 %v993
        %v1007 = vunpack.c.l.b16 %v994
        %v1008 = vunpack.c.l.b16 %v995
        %v1009 = vpack.c.b16 %v1006, %v1005
        %v1010 = vpack.c.b16 %v1008, %v1007
        %vm1011 = vcmask 261120
        %v1013 = vsel %vm1011, %v1000, 0
        %v1016 = vsel %vm1011, %v1009, 0
        %v1019 = vsel %vm1011, %v1010, 0
        %1021 = vmatpush.bf16.xpose.msra.mxu0 0
        %1022 = vmatpush.bf16.xpose.msra.mxu0 0
        %1023 = vmatpush.bf16.xpose.msra.mxu0 0
        %1024 = vmatpush.bf16.xpose.msra.mxu0 0
        %1025 = vmatpush.bf16.xpose.msra.mxu0 0
        %1026 = vmatpush.bf16.xpose.msra.mxu0 0
        %1027 = vmatpush.bf16.xpose.msra.mxu0 %v1019
        %1028 = vmatpush.bf16.xpose.msra.mxu0 %v1016
        %1029 = vmatmul.bf16.gmra.mxu0 %v1013
        %v1030 = vpop.f32.mrf.mxu0
        %v1031 = vadd.f32 0.0, %v1030
        %v1032 = vpop.f32.mrf.mxu0
        %v1033 = vadd.f32 0.0, %v1032
        %1034 = vdwg.mxu0
        %v1035 = vmul.f32 %v1031, 0.17677669
        %v1036 = vmul.f32 %v1033, 0.17677669
        %v1037 = vsel %vm1011, %v1035, -inf
        %1038 = vmax.xlane.f32.xlu0 %v1037
        %v1039 = vpop.xlane.xlu0 %1038
        %v1040 = vsel %vm1011, %v1036, -inf
        %1041 = vmax.xlane.f32.xlu0 %v1040
        %v1042 = vpop.xlane.xlu0 %1041
        %v1043 = vsub.f32 %v1035, %v1039
        %v1044 = vsub.f32 %v1036, %v1042
        %v1045 = vmul.f32 %v1043, 1.442695
        %v1046 = vpow.pop %v1045
        %v1047 = vmul.f32 %v1044, 1.442695
        %v1048 = vpow.pop %v1047
        %v1049 = vsel %vm1011, %v1046, 0.0
        %1050 = vadd.xlane.f32.xlu0 %v1049
        %v1051 = vpop.xlane.xlu0 %1050
        %v1052 = vsel %vm1011, %v1048, 0.0
        %1053 = vadd.xlane.f32.xlu0 %v1052
        %v1054 = vpop.xlane.xlu0 %1053
        %v1055 = vpack.c.bf16 %v1048, %v1046
        %v1060 = vunpack.c.l.b16 %v996
        %v1061 = vunpack.c.l.b16 %v997
        %v1062 = vunpack.c.l.b16 %v998
        %v1063 = vunpack.c.l.b16 %v999
        %v1064 = vpack.c.b16 %v1061, %v1060
        %v1065 = vpack.c.b16 %v1063, %v1062
        %v1069 = vsel %vm1011, %v1055, 0
        %1071 = vmatpush.bf16.msra.mxu0 0
        %1072 = vmatpush.bf16.msra.mxu0 0
        %1073 = vmatpush.bf16.msra.mxu0 0
        %1074 = vmatpush.bf16.msra.mxu0 0
        %1075 = vmatpush.bf16.msra.mxu0 0
        %1076 = vmatpush.bf16.msra.mxu0 0
        %1077 = vmatpush.bf16.msra.mxu0 %v1065
        %1078 = vmatpush.bf16.msra.mxu0 %v1064
        %1079 = vmatmul.bf16.gmra.mxu0 %v1069
        %v1080 = vpop.f32.mrf.mxu0
        %v1081 = vadd.f32 0.0, %v1080
        %v1082 = vpop.f32.mrf.mxu0
        %v1083 = vadd.f32 0.0, %v1082
        %1084 = vdwg.mxu0
        %v1085 = vrcp.pop %v1051
        %v1086 = vrcp.pop %v1054
        %v1087 = vmul.f32 %v1081, %v1085
        %v1088 = vmul.f32 %v1083, %v1086
        %v1089 = vpack.c.bf16 %v1088, %v1087
        %v1090 = vld [vmem:[#allocation12] sm:$0xf]
        %v1091 = vld [vmem:[#allocation12 + $0x4] sm:$0xf]
        %v1092 = vld [vmem:[#allocation12 + $0x8] sm:$0xf]
        %v1093 = vld [vmem:[#allocation12 + $0xc] sm:$0xf]
        %1095 = vrot.lane.b32.xlu0 %v1000, 96
        %v1096 = vpop.permute.xlu0 %1095
        %1097 = vrot.lane.b32.xlu0 %v1009, 96
        %v1098 = vpop.permute.xlu0 %1097
        %1099 = vrot.lane.b32.xlu0 %v1010, 96
        %v1100 = vpop.permute.xlu0 %1099
        %v1102 = vsel %vm1011, %v1096, 0
        %v1105 = vsel %vm1011, %v1098, 0
        %v1108 = vsel %vm1011, %v1100, 0
        %1110 = vmatpush.bf16.xpose.msra.mxu0 0
        %1111 = vmatpush.bf16.xpose.msra.mxu0 0
        %1112 = vmatpush.bf16.xpose.msra.mxu0 0
        %1113 = vmatpush.bf16.xpose.msra.mxu0 0
        %1114 = vmatpush.bf16.xpose.msra.mxu0 0
        %1115 = vmatpush.bf16.xpose.msra.mxu0 0
        %1116 = vmatpush.bf16.xpose.msra.mxu0 %v1108
        %1117 = vmatpush.bf16.xpose.msra.mxu0 %v1105
        %1118 = vmatmul.bf16.gmra.mxu0 %v1102
        %v1119 = vpop.f32.mrf.mxu0
        %v1120 = vadd.f32 0.0, %v1119
        %v1121 = vpop.f32.mrf.mxu0
        %v1122 = vadd.f32 0.0, %v1121
        %1123 = vdwg.mxu0
        %v1124 = vmul.f32 %v1120, 0.17677669
        %v1125 = vmul.f32 %v1122, 0.17677669
        %v1126 = vsel %vm1011, %v1124, -inf
        %1127 = vmax.xlane.f32.xlu0 %v1126
        %v1128 = vpop.xlane.xlu0 %1127
        %v1129 = vsel %vm1011, %v1125, -inf
        %1130 = vmax.xlane.f32.xlu0 %v1129
        %v1131 = vpop.xlane.xlu0 %1130
        %v1132 = vsub.f32 %v1124, %v1128
        %v1133 = vsub.f32 %v1125, %v1131
        %v1134 = vmul.f32 %v1132, 1.442695
        %v1135 = vpow.pop %v1134
        %v1136 = vmul.f32 %v1133, 1.442695
        %v1137 = vpow.pop %v1136
        %v1138 = vsel %vm1011, %v1135, 0.0
        %1139 = vadd.xlane.f32.xlu0 %v1138
        %v1140 = vpop.xlane.xlu0 %1139
        %v1141 = vsel %vm1011, %v1137, 0.0
        %1142 = vadd.xlane.f32.xlu0 %v1141
        %v1143 = vpop.xlane.xlu0 %1142
        %v1144 = vpack.c.bf16 %v1137, %v1135
        %1145 = vrot.lane.b32.xlu0 %v1064, 96
        %v1146 = vpop.permute.xlu0 %1145
        %1147 = vrot.lane.b32.xlu0 %v1065, 96
        %v1148 = vpop.permute.xlu0 %1147
        %v1152 = vsel %vm1011, %v1144, 0
        %1154 = vmatpush.bf16.msra.mxu0 0
        %1155 = vmatpush.bf16.msra.mxu0 0
        %1156 = vmatpush.bf16.msra.mxu0 0
        %1157 = vmatpush.bf16.msra.mxu0 0
        %1158 = vmatpush.bf16.msra.mxu0 0
        %1159 = vmatpush.bf16.msra.mxu0 0
        %1160 = vmatpush.bf16.msra.mxu0 %v1148
        %1161 = vmatpush.bf16.msra.mxu0 %v1146
        %1162 = vmatmul.bf16.gmra.mxu0 %v1152
        %v1163 = vpop.f32.mrf.mxu0
        %v1164 = vadd.f32 0.0, %v1163
        %v1165 = vpop.f32.mrf.mxu0
        %v1166 = vadd.f32 0.0, %v1165
        %1167 = vdwg.mxu0
        %v1168 = vrcp.pop %v1140
        %v1169 = vrcp.pop %v1143
        %v1170 = vmul.f32 %v1164, %v1168
        %v1171 = vmul.f32 %v1166, %v1169
        %v1172 = vpack.c.bf16 %v1171, %v1170
        %v1173 = vld [vmem:[#allocation12 + $0x10] sm:$0xf]
        %v1174 = vld [vmem:[#allocation12 + $0x14] sm:$0xf]
        %v1175 = vld [vmem:[#allocation12 + $0x18] sm:$0xf]
        %v1176 = vld [vmem:[#allocation12 + $0x1c] sm:$0xf]
        %v1181 = vunpack.c.l.b16 %v1173
        %v1182 = vunpack.c.l.b16 %v1174
        %v1183 = vunpack.c.l.b16 %v1175
        %v1184 = vunpack.c.l.b16 %v1176
        %v1185 = vpack.c.b16 %v1182, %v1181
        %v1186 = vpack.c.b16 %v1184, %v1183
        %v1190 = vsel %vm1011, %v1172, 0
        %1192 = vmatpush.bf16.msra.mxu0 0
        %1193 = vmatpush.bf16.msra.mxu0 0
        %1194 = vmatpush.bf16.msra.mxu0 0
        %1195 = vmatpush.bf16.msra.mxu0 0
        %1196 = vmatpush.bf16.msra.mxu0 0
        %1197 = vmatpush.bf16.msra.mxu0 0
        %1198 = vmatpush.bf16.msra.mxu0 %v1186
        %1199 = vmatpush.bf16.msra.mxu0 %v1185
        %1200 = vmatmul.bf16.gmra.mxu0 %v1190
        %v1201 = vpop.f32.mrf.mxu0
        %v1202 = vadd.f32 0.0, %v1201
        %v1203 = vpop.f32.mrf.mxu0
        %v1204 = vadd.f32 0.0, %v1203
        %1205 = vdwg.mxu0
        %v1210 = vunpack.c.l.b16 %v1090
        %v1211 = vunpack.c.l.b16 %v1091
        %v1212 = vunpack.c.l.b16 %v1092
        %v1213 = vunpack.c.l.b16 %v1093
        %v1214 = vpack.c.b16 %v1211, %v1210
        %v1215 = vpack.c.b16 %v1213, %v1212
        %v1219 = vsel %vm1011, %v1089, 0
        %1221 = vmatpush.bf16.msra.mxu0 0
        %1222 = vmatpush.bf16.msra.mxu0 0
        %1223 = vmatpush.bf16.msra.mxu0 0
        %1224 = vmatpush.bf16.msra.mxu0 0
        %1225 = vmatpush.bf16.msra.mxu0 0
        %1226 = vmatpush.bf16.msra.mxu0 0
        %1227 = vmatpush.bf16.msra.mxu0 %v1215
        %1228 = vmatpush.bf16.msra.mxu0 %v1214
        %1229 = vmatmul.bf16.gmra.mxu0 %v1219
        %v1230 = vpop.f32.mrf.mxu0
        %v1231 = vadd.f32 %v1202, %v1230
        %v1232 = vpop.f32.mrf.mxu0
        %v1233 = vadd.f32 %v1204, %v1232
        %1234 = vdwg.mxu0
        %1235 = vrot.lane.b32.xlu0 %v1000, 64
        %v1236 = vpop.permute.xlu0 %1235
        %1237 = vrot.lane.b32.xlu0 %v1009, 64
        %v1238 = vpop.permute.xlu0 %1237
        %1239 = vrot.lane.b32.xlu0 %v1010, 64
        %v1240 = vpop.permute.xlu0 %1239
        %v1242 = vsel %vm1011, %v1236, 0
        %v1245 = vsel %vm1011, %v1238, 0
        %v1248 = vsel %vm1011, %v1240, 0
        %1250 = vmatpush.bf16.xpose.msra.mxu0 0
        %1251 = vmatpush.bf16.xpose.msra.mxu0 0
        %1252 = vmatpush.bf16.xpose.msra.mxu0 0
        %1253 = vmatpush.bf16.xpose.msra.mxu0 0
        %1254 = vmatpush.bf16.xpose.msra.mxu0 0
        %1255 = vmatpush.bf16.xpose.msra.mxu0 0
        %1256 = vmatpush.bf16.xpose.msra.mxu0 %v1248
        %1257 = vmatpush.bf16.xpose.msra.mxu0 %v1245
        %1258 = vmatmul.bf16.gmra.mxu0 %v1242
        %v1259 = vpop.f32.mrf.mxu0
        %v1260 = vadd.f32 0.0, %v1259
        %v1261 = vpop.f32.mrf.mxu0
        %v1262 = vadd.f32 0.0, %v1261
        %1263 = vdwg.mxu0
        %v1264 = vmul.f32 %v1260, 0.17677669
        %v1265 = vmul.f32 %v1262, 0.17677669
        %v1266 = vsel %vm1011, %v1264, -inf
        %1267 = vmax.xlane.f32.xlu0 %v1266
        %v1268 = vpop.xlane.xlu0 %1267
        %v1269 = vsel %vm1011, %v1265, -inf
        %1270 = vmax.xlane.f32.xlu0 %v1269
        %v1271 = vpop.xlane.xlu0 %1270
        %v1272 = vsub.f32 %v1264, %v1268
        %v1273 = vsub.f32 %v1265, %v1271
        %v1274 = vmul.f32 %v1272, 1.442695
        %v1275 = vpow.pop %v1274
        %v1276 = vmul.f32 %v1273, 1.442695
        %v1277 = vpow.pop %v1276
        %v1278 = vsel %vm1011, %v1275, 0.0
        %1279 = vadd.xlane.f32.xlu0 %v1278
        %v1280 = vpop.xlane.xlu0 %1279
        %v1281 = vsel %vm1011, %v1277, 0.0
        %1282 = vadd.xlane.f32.xlu0 %v1281
        %v1283 = vpop.xlane.xlu0 %1282
        %v1284 = vpack.c.bf16 %v1277, %v1275
        %1285 = vrot.lane.b32.xlu0 %v1064, 64
        %v1286 = vpop.permute.xlu0 %1285
        %1287 = vrot.lane.b32.xlu0 %v1065, 64
        %v1288 = vpop.permute.xlu0 %1287
        %v1292 = vsel %vm1011, %v1284, 0
        %1294 = vmatpush.bf16.msra.mxu0 0
        %1295 = vmatpush.bf16.msra.mxu0 0
        %1296 = vmatpush.bf16.msra.mxu0 0
        %1297 = vmatpush.bf16.msra.mxu0 0
        %1298 = vmatpush.bf16.msra.mxu0 0
        %1299 = vmatpush.bf16.msra.mxu0 0
        %1300 = vmatpush.bf16.msra.mxu0 %v1288
        %1301 = vmatpush.bf16.msra.mxu0 %v1286
        %1302 = vmatmul.bf16.gmra.mxu0 %v1292
        %v1303 = vpop.f32.mrf.mxu0
        %v1304 = vadd.f32 0.0, %v1303
        %v1305 = vpop.f32.mrf.mxu0
        %v1306 = vadd.f32 0.0, %v1305
        %1307 = vdwg.mxu0
        %v1308 = vrcp.pop %v1280
        %v1309 = vrcp.pop %v1283
        %v1310 = vmul.f32 %v1304, %v1308
        %v1311 = vmul.f32 %v1306, %v1309
        %v1312 = vpack.c.bf16 %v1311, %v1310
        %v1313 = vld [vmem:[#allocation12 + $0x20] sm:$0xf]
        %v1314 = vld [vmem:[#allocation12 + $0x24] sm:$0xf]
        %v1315 = vld [vmem:[#allocation12 + $0x28] sm:$0xf]
        %v1316 = vld [vmem:[#allocation12 + $0x2c] sm:$0xf]
        %v1321 = vunpack.c.l.b16 %v1313
        %v1322 = vunpack.c.l.b16 %v1314
        %v1323 = vunpack.c.l.b16 %v1315
        %v1324 = vunpack.c.l.b16 %v1316
        %v1325 = vpack.c.b16 %v1322, %v1321
        %v1326 = vpack.c.b16 %v1324, %v1323
        %v1330 = vsel %vm1011, %v1312, 0
        %1332 = vmatpush.bf16.msra.mxu0 0
        %1333 = vmatpush.bf16.msra.mxu0 0
        %1334 = vmatpush.bf16.msra.mxu0 0
        %1335 = vmatpush.bf16.msra.mxu0 0
        %1336 = vmatpush.bf16.msra.mxu0 0
        %1337 = vmatpush.bf16.msra.mxu0 0
        %1338 = vmatpush.bf16.msra.mxu0 %v1326
        %1339 = vmatpush.bf16.msra.mxu0 %v1325
        %1340 = vmatmul.bf16.gmra.mxu0 %v1330
        %v1341 = vpop.f32.mrf.mxu0
        %v1342 = vadd.f32 0.0, %v1341
        %v1343 = vpop.f32.mrf.mxu0
        %v1344 = vadd.f32 0.0, %v1343
        %1345 = vdwg.mxu0
        %v1346 = vadd.f32 %v1231, %v1342
        %v1347 = vadd.f32 %v1233, %v1344
        %1348 = vrot.lane.b32.xlu0 %v1000, 32
        %v1349 = vpop.permute.xlu0 %1348
        %1350 = vrot.lane.b32.xlu0 %v1009, 32
        %v1351 = vpop.permute.xlu0 %1350
        %1352 = vrot.lane.b32.xlu0 %v1010, 32
        %v1353 = vpop.permute.xlu0 %1352
        %v1355 = vsel %vm1011, %v1349, 0
        %v1358 = vsel %vm1011, %v1351, 0
        %v1361 = vsel %vm1011, %v1353, 0
        %1363 = vmatpush.bf16.xpose.msra.mxu0 0
        %1364 = vmatpush.bf16.xpose.msra.mxu0 0
        %1365 = vmatpush.bf16.xpose.msra.mxu0 0
        %1366 = vmatpush.bf16.xpose.msra.mxu0 0
        %1367 = vmatpush.bf16.xpose.msra.mxu0 0
        %1368 = vmatpush.bf16.xpose.msra.mxu0 0
        %1369 = vmatpush.bf16.xpose.msra.mxu0 %v1361
        %1370 = vmatpush.bf16.xpose.msra.mxu0 %v1358
        %1371 = vmatmul.bf16.gmra.mxu0 %v1355
        %v1372 = vpop.f32.mrf.mxu0
        %v1373 = vadd.f32 0.0, %v1372
        %v1374 = vpop.f32.mrf.mxu0
        %v1375 = vadd.f32 0.0, %v1374
        %1376 = vdwg.mxu0
        %v1377 = vmul.f32 %v1373, 0.17677669
        %v1378 = vmul.f32 %v1375, 0.17677669
        %v1379 = vsel %vm1011, %v1377, -inf
        %1380 = vmax.xlane.f32.xlu0 %v1379
        %v1381 = vpop.xlane.xlu0 %1380
        %v1382 = vsel %vm1011, %v1378, -inf
        %1383 = vmax.xlane.f32.xlu0 %v1382
        %v1384 = vpop.xlane.xlu0 %1383
        %v1385 = vsub.f32 %v1377, %v1381
        %v1386 = vsub.f32 %v1378, %v1384
        %v1387 = vmul.f32 %v1385, 1.442695
        %v1388 = vpow.pop %v1387
        %v1389 = vmul.f32 %v1386, 1.442695
        %v1390 = vpow.pop %v1389
        %v1391 = vsel %vm1011, %v1388, 0.0
        %1392 = vadd.xlane.f32.xlu0 %v1391
        %v1393 = vpop.xlane.xlu0 %1392
        %v1394 = vsel %vm1011, %v1390, 0.0
        %1395 = vadd.xlane.f32.xlu0 %v1394
        %v1396 = vpop.xlane.xlu0 %1395
        %v1397 = vpack.c.bf16 %v1390, %v1388
        %1398 = vrot.lane.b32.xlu0 %v1064, 32
        %v1399 = vpop.permute.xlu0 %1398
        %1400 = vrot.lane.b32.xlu0 %v1065, 32
        %v1401 = vpop.permute.xlu0 %1400
        %v1405 = vsel %vm1011, %v1397, 0
        %1407 = vmatpush.bf16.msra.mxu0 0
        %1408 = vmatpush.bf16.msra.mxu0 0
        %1409 = vmatpush.bf16.msra.mxu0 0
        %1410 = vmatpush.bf16.msra.mxu0 0
        %1411 = vmatpush.bf16.msra.mxu0 0
        %1412 = vmatpush.bf16.msra.mxu0 0
        %1413 = vmatpush.bf16.msra.mxu0 %v1401
        %1414 = vmatpush.bf16.msra.mxu0 %v1399
        %1415 = vmatmul.bf16.gmra.mxu0 %v1405
        %v1416 = vpop.f32.mrf.mxu0
        %v1417 = vadd.f32 0.0, %v1416
        %v1418 = vpop.f32.mrf.mxu0
        %v1419 = vadd.f32 0.0, %v1418
        %1420 = vdwg.mxu0
        %v1421 = vrcp.pop %v1393
        %v1422 = vrcp.pop %v1396
        %v1423 = vmul.f32 %v1417, %v1421
        %v1424 = vmul.f32 %v1419, %v1422
        %v1425 = vpack.c.bf16 %v1424, %v1423
        %v1426 = vld [vmem:[#allocation12 + $0x30] sm:$0xf]
        %v1427 = vld [vmem:[#allocation12 + $0x34] sm:$0xf]
        %v1428 = vld [vmem:[#allocation12 + $0x38] sm:$0xf]
        %v1429 = vld [vmem:[#allocation12 + $0x3c] sm:$0xf]
        %v1434 = vunpack.c.l.b16 %v1426
        %v1435 = vunpack.c.l.b16 %v1427
        %v1436 = vunpack.c.l.b16 %v1428
        %v1437 = vunpack.c.l.b16 %v1429
        %v1438 = vpack.c.b16 %v1435, %v1434
        %v1439 = vpack.c.b16 %v1437, %v1436
        %v1443 = vsel %vm1011, %v1425, 0
        %1445 = vmatpush.bf16.msra.mxu0 0
        %1446 = vmatpush.bf16.msra.mxu0 0
        %1447 = vmatpush.bf16.msra.mxu0 0
        %1448 = vmatpush.bf16.msra.mxu0 0
        %1449 = vmatpush.bf16.msra.mxu0 0
        %1450 = vmatpush.bf16.msra.mxu0 0
        %1451 = vmatpush.bf16.msra.mxu0 %v1439
        %1452 = vmatpush.bf16.msra.mxu0 %v1438
        %1453 = vmatmul.bf16.gmra.mxu0 %v1443
        %v1454 = vpop.f32.mrf.mxu0
        %v1455 = vadd.f32 0.0, %v1454
        %v1456 = vpop.f32.mrf.mxu0
        %v1457 = vadd.f32 0.0, %v1456
        %1458 = vdwg.mxu0
        %v1459 = vadd.f32 %v1346, %v1455
        %v1460 = vadd.f32 %v1347, %v1457
        %v1461 = vadd.f32 %v911, %v1459
        %v1462 = vadd.f32 %v912, %v1460
        %v1463 = vld [vmem:[%s7] sm:$0x1]
        %v1465 = vperm.slane %v1463, 0
        %v1467 = vadd.f32 %v1461, %v1465
        %v1468 = vadd.f32 %v1462, %v1465
        %v1469 = vld [vmem:[#allocation13] sm:$0x1]
        %v1470 = vld [vmem:[%s9] sm:$0x1]
        %1471 = vadd.xlane.f32.xlu0 %v1467
        %v1472 = vpop.xlane.xlu0 %1471
        %1473 = vadd.xlane.f32.xlu0 %v1468
        %v1474 = vpop.xlane.xlu0 %1473
        %v1475 = vrcp.pop 128.0
        %v1476 = vmul.f32 128.0, %v1475
        %v1477 = vsub.f32 1.0, %v1476
        %v1478 = vmul.f32 %v1475, %v1477
        %v1479 = vadd.f32 %v1475, %v1478
        %vm1480 = vweird.f32 %v1475
        %v1481 = vsel %vm1480, %v1475, %v1479
        %v1482 = vmul.f32 %v1472, %v1481
        %v1483 = vmul.f32 %v1474, %v1481
        %v1484 = vsub.f32 %v1467, %v1482
        %v1485 = vsub.f32 %v1468, %v1483
        %v1486 = vmul.f32 %v1484, %v1484
        %v1487 = vmul.f32 %v1485, %v1485
        %1488 = vadd.xlane.f32.xlu0 %v1486
        %v1489 = vpop.xlane.xlu0 %1488
        %1490 = vadd.xlane.f32.xlu0 %v1487
        %v1491 = vpop.xlane.xlu0 %1490
        %v1492 = vmul.f32 %v1489, %v1481
        %v1493 = vmul.f32 %v1491, %v1481
        %v1494 = vadd.f32 %v1492, 1e-05
        %v1495 = vadd.f32 %v1493, 1e-05
        %v1496 = vrsqrt.pop %v1494
        %v1497 = vmul.f32 %v1496, %v1494
        %v1498 = vmul.f32 %v1497, %v1496
        %v1499 = vmul.f32 0.5, %v1498
        %v1500 = vsub.f32 1.5, %v1499
        %v1501 = vmul.f32 %v1496, %v1500
        %vm1502 = vweird.f32 %v1494
        %vm1503 = vweird.f32 %v1496
        %vm1504 = vmor %vm1502, %vm1503
        %v1505 = vsel %vm1504, %v1496, %v1501
        %v1506 = vrsqrt.pop %v1495
        %v1507 = vmul.f32 %v1506, %v1495
        %v1508 = vmul.f32 %v1507, %v1506
        %v1509 = vmul.f32 0.5, %v1508
        %v1510 = vsub.f32 1.5, %v1509
        %v1511 = vmul.f32 %v1506, %v1510
        %vm1512 = vweird.f32 %v1495
        %vm1513 = vweird.f32 %v1506
        %vm1514 = vmor %vm1512, %vm1513
        %v1515 = vsel %vm1514, %v1506, %v1511
        %v1516 = vmul.f32 %v1484, %v1505
        %v1517 = vmul.f32 %v1485, %v1515
        %v1519 = vperm.slane %v1469, 0
        %v1521 = vmul.f32 %v1516, %v1519
        %v1522 = vmul.f32 %v1517, %v1519
        %v1524 = vperm.slane %v1470, 0
        %v1526 = vadd.f32 %v1521, %v1524
        %v1527 = vadd.f32 %v1522, %v1524
        %v1528 = vpack.c.bf16 %v1527, %v1526
        %v1529 = vld [vmem:[#allocation15] sm:$0xff]
        %v1530 = vld [vmem:[#allocation15 + $0x8] sm:$0xff]
        %v1531 = vld [vmem:[#allocation15 + $0x10] sm:$0xff]
        %v1532 = vld [vmem:[#allocation15 + $0x18] sm:$0xff]
        %v1533 = vld [vmem:[#allocation15 + $0x20] sm:$0xff]
        %v1534 = vld [vmem:[#allocation15 + $0x28] sm:$0xff]
        %v1535 = vld [vmem:[#allocation15 + $0x30] sm:$0xff]
        %v1536 = vld [vmem:[#allocation15 + $0x38] sm:$0xff]
        %v1537 = vld [vmem:[#allocation15 + $0x40] sm:$0xff]
        %v1538 = vld [vmem:[#allocation15 + $0x48] sm:$0xff]
        %v1539 = vld [vmem:[#allocation15 + $0x50] sm:$0xff]
        %v1540 = vld [vmem:[#allocation15 + $0x58] sm:$0xff]
        %v1541 = vld [vmem:[#allocation15 + $0x60] sm:$0xff]
        %v1542 = vld [vmem:[#allocation15 + $0x68] sm:$0xff]
        %v1543 = vld [vmem:[#allocation15 + $0x70] sm:$0xff]
        %v1544 = vld [vmem:[#allocation15 + $0x78] sm:$0xff]
        %v1545 = vld [vmem:[#allocation15 + $0x80] sm:$0xff]
        %v1546 = vld [vmem:[#allocation15 + $0x88] sm:$0xff]
        %v1547 = vld [vmem:[#allocation15 + $0x90] sm:$0xff]
        %v1548 = vld [vmem:[#allocation15 + $0x98] sm:$0xff]
        %v1549 = vld [vmem:[#allocation15 + $0xa0] sm:$0xff]
        %v1550 = vld [vmem:[#allocation15 + $0xa8] sm:$0xff]
        %v1551 = vld [vmem:[#allocation15 + $0xb0] sm:$0xff]
        %v1552 = vld [vmem:[#allocation15 + $0xb8] sm:$0xff]
        %v1553 = vld [vmem:[#allocation15 + $0xc0] sm:$0xff]
        %v1554 = vld [vmem:[#allocation15 + $0xc8] sm:$0xff]
        %v1555 = vld [vmem:[#allocation15 + $0xd0] sm:$0xff]
        %v1556 = vld [vmem:[#allocation15 + $0xd8] sm:$0xff]
        %v1557 = vld [vmem:[#allocation15 + $0xe0] sm:$0xff]
        %v1558 = vld [vmem:[#allocation15 + $0xe8] sm:$0xff]
        %v1559 = vld [vmem:[#allocation15 + $0xf0] sm:$0xff]
        %v1560 = vld [vmem:[#allocation15 + $0xf8] sm:$0xff]
        %v1561 = vld [vmem:[%s11] sm:$0xf]
        %v1563 = vperm.slane %v1561, 0
        %v1564 = vperm.slane %v1561, 1
        %v1565 = vperm.slane %v1561, 2
        %v1566 = vperm.slane %v1561, 3
        %v1603 = vunpack.c.l.b16 %v1529
        %v1604 = vunpack.c.h.b16 %v1529
        %v1605 = vunpack.c.l.b16 %v1530
        %v1606 = vunpack.c.h.b16 %v1530
        %v1607 = vunpack.c.l.b16 %v1531
        %v1608 = vunpack.c.h.b16 %v1531
        %v1609 = vunpack.c.l.b16 %v1532
        %v1610 = vunpack.c.h.b16 %v1532
        %v1611 = vunpack.c.l.b16 %v1533
        %v1612 = vunpack.c.h.b16 %v1533
        %v1613 = vunpack.c.l.b16 %v1534
        %v1614 = vunpack.c.h.b16 %v1534
        %v1615 = vunpack.c.l.b16 %v1535
        %v1616 = vunpack.c.h.b16 %v1535
        %v1617 = vunpack.c.l.b16 %v1536
        %v1618 = vunpack.c.h.b16 %v1536
        %v1619 = vunpack.c.l.b16 %v1537
        %v1620 = vunpack.c.h.b16 %v1537
        %v1621 = vunpack.c.l.b16 %v1538
        %v1622 = vunpack.c.h.b16 %v1538
        %v1623 = vunpack.c.l.b16 %v1539
        %v1624 = vunpack.c.h.b16 %v1539
        %v1625 = vunpack.c.l.b16 %v1540
        %v1626 = vunpack.c.h.b16 %v1540
        %v1627 = vunpack.c.l.b16 %v1541
        %v1628 = vunpack.c.h.b16 %v1541
        %v1629 = vunpack.c.l.b16 %v1542
        %v1630 = vunpack.c.h.b16 %v1542
        %v1631 = vunpack.c.l.b16 %v1543
        %v1632 = vunpack.c.h.b16 %v1543
        %v1633 = vunpack.c.l.b16 %v1544
        %v1634 = vunpack.c.h.b16 %v1544
        %v1635 = vunpack.c.l.b16 %v1545
        %v1636 = vunpack.c.h.b16 %v1545
        %v1637 = vunpack.c.l.b16 %v1546
        %v1638 = vunpack.c.h.b16 %v1546
        %v1639 = vunpack.c.l.b16 %v1547
        %v1640 = vunpack.c.h.b16 %v1547
        %v1641 = vunpack.c.l.b16 %v1548
        %v1642 = vunpack.c.h.b16 %v1548
        %v1643 = vunpack.c.l.b16 %v1549
        %v1644 = vunpack.c.h.b16 %v1549
        %v1645 = vunpack.c.l.b16 %v1550
        %v1646 = vunpack.c.h.b16 %v1550
        %v1647 = vunpack.c.l.b16 %v1551
        %v1648 = vunpack.c.h.b16 %v1551
        %v1649 = vunpack.c.l.b16 %v1552
        %v1650 = vunpack.c.h.b16 %v1552
        %v1651 = vunpack.c.l.b16 %v1553
        %v1652 = vunpack.c.h.b16 %v1553
        %v1653 = vunpack.c.l.b16 %v1554
        %v1654 = vunpack.c.h.b16 %v1554
        %v1655 = vunpack.c.l.b16 %v1555
        %v1656 = vunpack.c.h.b16 %v1555
        %v1657 = vunpack.c.l.b16 %v1556
        %v1658 = vunpack.c.h.b16 %v1556
        %v1659 = vunpack.c.l.b16 %v1557
        %v1660 = vunpack.c.h.b16 %v1557
        %v1661 = vunpack.c.l.b16 %v1558
        %v1662 = vunpack.c.h.b16 %v1558
        %v1663 = vunpack.c.l.b16 %v1559
        %v1664 = vunpack.c.h.b16 %v1559
        %v1665 = vunpack.c.l.b16 %v1560
        %v1666 = vunpack.c.h.b16 %v1560
        %v1667 = vpack.c.b16 %v1607, %v1603
        %v1668 = vpack.c.b16 %v1608, %v1604
        %v1669 = vpack.c.b16 %v1609, %v1605
        %v1670 = vpack.c.b16 %v1610, %v1606
        %v1671 = vpack.c.b16 %v1615, %v1611
        %v1672 = vpack.c.b16 %v1616, %v1612
        %v1673 = vpack.c.b16 %v1617, %v1613
        %v1674 = vpack.c.b16 %v1618, %v1614
        %v1675 = vpack.c.b16 %v1623, %v1619
        %v1676 = vpack.c.b16 %v1624, %v1620
        %v1677 = vpack.c.b16 %v1625, %v1621
        %v1678 = vpack.c.b16 %v1626, %v1622
        %v1679 = vpack.c.b16 %v1631, %v1627
        %v1680 = vpack.c.b16 %v1632, %v1628
        %v1681 = vpack.c.b16 %v1633, %v1629
        %v1682 = vpack.c.b16 %v1634, %v1630
        %v1683 = vpack.c.b16 %v1639, %v1635
        %v1684 = vpack.c.b16 %v1640, %v1636
        %v1685 = vpack.c.b16 %v1641, %v1637
        %v1686 = vpack.c.b16 %v1642, %v1638
        %v1687 = vpack.c.b16 %v1647, %v1643
        %v1688 = vpack.c.b16 %v1648, %v1644
        %v1689 = vpack.c.b16 %v1649, %v1645
        %v1690 = vpack.c.b16 %v1650, %v1646
        %v1691 = vpack.c.b16 %v1655, %v1651
        %v1692 = vpack.c.b16 %v1656, %v1652
        %v1693 = vpack.c.b16 %v1657, %v1653
        %v1694 = vpack.c.b16 %v1658, %v1654
        %v1695 = vpack.c.b16 %v1663, %v1659
        %v1696 = vpack.c.b16 %v1664, %v1660
        %v1697 = vpack.c.b16 %v1665, %v1661
        %v1698 = vpack.c.b16 %v1666, %v1662
        %1731 = vmatpush.bf16.msra.mxu0 %v1695
        %1732 = vmatpush.bf16.msra.mxu0 %v1691
        %1733 = vmatpush.bf16.msra.mxu0 %v1687
        %1734 = vmatpush.bf16.msra.mxu0 %v1683
        %1735 = vmatpush.bf16.msra.mxu0 %v1679
        %1736 = vmatpush.bf16.msra.mxu0 %v1675
        %1737 = vmatpush.bf16.msra.mxu0 %v1671
        %1738 = vmatpush.bf16.msra.mxu0 %v1667
        %1739 = vmatmul.bf16.gmra.mxu0 %v1528
        %v1740 = vpop.f32.mrf.mxu0
        %v1741 = vadd.f32 %v1563, %v1740
        %v1742 = vpop.f32.mrf.mxu0
        %v1743 = vadd.f32 %v1563, %v1742
        %1744 = vdwg.mxu0
        %1745 = vmatpush.bf16.msra.mxu0 %v1696
        %1746 = vmatpush.bf16.msra.mxu0 %v1692
        %1747 = vmatpush.bf16.msra.mxu0 %v1688
        %1748 = vmatpush.bf16.msra.mxu0 %v1684
        %1749 = vmatpush.bf16.msra.mxu0 %v1680
        %1750 = vmatpush.bf16.msra.mxu0 %v1676
        %1751 = vmatpush.bf16.msra.mxu0 %v1672
        %1752 = vmatpush.bf16.msra.mxu0 %v1668
        %1753 = vmatmul.bf16.gmra.mxu0 %v1528
        %v1754 = vpop.f32.mrf.mxu0
        %v1755 = vadd.f32 %v1564, %v1754
        %v1756 = vpop.f32.mrf.mxu0
        %v1757 = vadd.f32 %v1564, %v1756
        %1758 = vdwg.mxu0
        %1759 = vmatpush.bf16.msra.mxu0 %v1697
        %1760 = vmatpush.bf16.msra.mxu0 %v1693
        %1761 = vmatpush.bf16.msra.mxu0 %v1689
        %1762 = vmatpush.bf16.msra.mxu0 %v1685
        %1763 = vmatpush.bf16.msra.mxu0 %v1681
        %1764 = vmatpush.bf16.msra.mxu0 %v1677
        %1765 = vmatpush.bf16.msra.mxu0 %v1673
        %1766 = vmatpush.bf16.msra.mxu0 %v1669
        %1767 = vmatmul.bf16.gmra.mxu0 %v1528
        %v1768 = vpop.f32.mrf.mxu0
        %v1769 = vadd.f32 %v1565, %v1768
        %v1770 = vpop.f32.mrf.mxu0
        %v1771 = vadd.f32 %v1565, %v1770
        %1772 = vdwg.mxu0
        %1773 = vmatpush.bf16.msra.mxu0 %v1698
        %1774 = vmatpush.bf16.msra.mxu0 %v1694
        %1775 = vmatpush.bf16.msra.mxu0 %v1690
        %1776 = vmatpush.bf16.msra.mxu0 %v1686
        %1777 = vmatpush.bf16.msra.mxu0 %v1682
        %1778 = vmatpush.bf16.msra.mxu0 %v1678
        %1779 = vmatpush.bf16.msra.mxu0 %v1674
        %1780 = vmatpush.bf16.msra.mxu0 %v1670
        %1781 = vmatmul.bf16.gmra.mxu0 %v1528
        %v1782 = vpop.f32.mrf.mxu0
        %v1783 = vadd.f32 %v1566, %v1782
        %v1784 = vpop.f32.mrf.mxu0
        %v1785 = vadd.f32 %v1566, %v1784
        %1786 = vdwg.mxu0
        %v1787 = vmul.f32 %v1741, 0.5
        %v1788 = vmul.f32 %v1755, 0.5
        %v1789 = vmul.f32 %v1769, 0.5
        %v1790 = vmul.f32 %v1783, 0.5
        %v1791 = vmul.f32 %v1743, 0.5
        %v1792 = vmul.f32 %v1757, 0.5
        %v1793 = vmul.f32 %v1771, 0.5
        %v1794 = vmul.f32 %v1785, 0.5
        %v1795 = vmul.f32 %v1741, 0.044715
        %v1796 = vmul.f32 %v1755, 0.044715
        %v1797 = vmul.f32 %v1769, 0.044715
        %v1798 = vmul.f32 %v1783, 0.044715
        %v1799 = vmul.f32 %v1743, 0.044715
        %v1800 = vmul.f32 %v1757, 0.044715
        %v1801 = vmul.f32 %v1771, 0.044715
        %v1802 = vmul.f32 %v1785, 0.044715
        %v1803 = vmul.f32 %v1795, %v1741
        %v1804 = vmul.f32 %v1796, %v1755
        %v1805 = vmul.f32 %v1797, %v1769
        %v1806 = vmul.f32 %v1798, %v1783
        %v1807 = vmul.f32 %v1799, %v1743
        %v1808 = vmul.f32 %v1800, %v1757
        %v1809 = vmul.f32 %v1801, %v1771
        %v1810 = vmul.f32 %v1802, %v1785
        %v1811 = vmul.f32 %v1803, %v1741
        %v1812 = vmul.f32 %v1804, %v1755
        %v1813 = vmul.f32 %v1805, %v1769
        %v1814 = vmul.f32 %v1806, %v1783
        %v1815 = vmul.f32 %v1807, %v1743
        %v1816 = vmul.f32 %v1808, %v1757
        %v1817 = vmul.f32 %v1809, %v1771
        %v1818 = vmul.f32 %v1810, %v1785
        %v1819 = vadd.f32 %v1741, %v1811
        %v1820 = vadd.f32 %v1755, %v1812
        %v1821 = vadd.f32 %v1769, %v1813
        %v1822 = vadd.f32 %v1783, %v1814
        %v1823 = vadd.f32 %v1743, %v1815
        %v1824 = vadd.f32 %v1757, %v1816
        %v1825 = vadd.f32 %v1771, %v1817
        %v1826 = vadd.f32 %v1785, %v1818
        %v1827 = vmul.f32 %v1819, 0.7978846
        %v1828 = vmul.f32 %v1820, 0.7978846
        %v1829 = vmul.f32 %v1821, 0.7978846
        %v1830 = vmul.f32 %v1822, 0.7978846
        %v1831 = vmul.f32 %v1823, 0.7978846
        %v1832 = vmul.f32 %v1824, 0.7978846
        %v1833 = vmul.f32 %v1825, 0.7978846
        %v1834 = vmul.f32 %v1826, 0.7978846
        %v1835 = vtanh.pop %v1827
        %v1836 = vtanh.pop %v1828
        %v1837 = vtanh.pop %v1829
        %v1838 = vtanh.pop %v1830
        %v1839 = vtanh.pop %v1831
        %v1840 = vtanh.pop %v1832
        %v1841 = vtanh.pop %v1833
        %v1842 = vtanh.pop %v1834
        %v1843 = vadd.f32 %v1835, 1.0
        %v1844 = vadd.f32 %v1836, 1.0
        %v1845 = vadd.f32 %v1837, 1.0
        %v1846 = vadd.f32 %v1838, 1.0
        %v1847 = vadd.f32 %v1839, 1.0
        %v1848 = vadd.f32 %v1840, 1.0
        %v1849 = vadd.f32 %v1841, 1.0
        %v1850 = vadd.f32 %v1842, 1.0
        %v1851 = vmul.f32 %v1787, %v1843
        %v1852 = vmul.f32 %v1788, %v1844
        %v1853 = vmul.f32 %v1789, %v1845
        %v1854 = vmul.f32 %v1790, %v1846
        %v1855 = vmul.f32 %v1791, %v1847
        %v1856 = vmul.f32 %v1792, %v1848
        %v1857 = vmul.f32 %v1793, %v1849
        %v1858 = vmul.f32 %v1794, %v1850
        %v1859 = vpack.c.bf16 %v1855, %v1851
        %v1860 = vpack.c.bf16 %v1856, %v1852
        %v1861 = vpack.c.bf16 %v1857, %v1853
        %v1862 = vpack.c.bf16 %v1858, %v1854
        %v1863 = vld [vmem:[#allocation16] sm:$0xf]
        %v1864 = vld [vmem:[#allocation16 + $0x4] sm:$0xf]
        %v1865 = vld [vmem:[#allocation16 + $0x8] sm:$0xf]
        %v1866 = vld [vmem:[#allocation16 + $0xc] sm:$0xf]
        %v1867 = vld [vmem:[#allocation16 + $0x10] sm:$0xf]
        %v1868 = vld [vmem:[#allocation16 + $0x14] sm:$0xf]
        %v1869 = vld [vmem:[#allocation16 + $0x18] sm:$0xf]
        %v1870 = vld [vmem:[#allocation16 + $0x1c] sm:$0xf]
        %v1871 = vld [vmem:[#allocation16 + $0x20] sm:$0xf]
        %v1872 = vld [vmem:[#allocation16 + $0x24] sm:$0xf]
        %v1873 = vld [vmem:[#allocation16 + $0x28] sm:$0xf]
        %v1874 = vld [vmem:[#allocation16 + $0x2c] sm:$0xf]
        %v1875 = vld [vmem:[#allocation16 + $0x30] sm:$0xf]
        %v1876 = vld [vmem:[#allocation16 + $0x34] sm:$0xf]
        %v1877 = vld [vmem:[#allocation16 + $0x38] sm:$0xf]
        %v1878 = vld [vmem:[#allocation16 + $0x3c] sm:$0xf]
        %v1879 = vld [vmem:[#allocation16 + $0x40] sm:$0xf]
        %v1880 = vld [vmem:[#allocation16 + $0x44] sm:$0xf]
        %v1881 = vld [vmem:[#allocation16 + $0x48] sm:$0xf]
        %v1882 = vld [vmem:[#allocation16 + $0x4c] sm:$0xf]
        %v1883 = vld [vmem:[#allocation16 + $0x50] sm:$0xf]
        %v1884 = vld [vmem:[#allocation16 + $0x54] sm:$0xf]
        %v1885 = vld [vmem:[#allocation16 + $0x58] sm:$0xf]
        %v1886 = vld [vmem:[#allocation16 + $0x5c] sm:$0xf]
        %v1887 = vld [vmem:[#allocation16 + $0x60] sm:$0xf]
        %v1888 = vld [vmem:[#allocation16 + $0x64] sm:$0xf]
        %v1889 = vld [vmem:[#allocation16 + $0x68] sm:$0xf]
        %v1890 = vld [vmem:[#allocation16 + $0x6c] sm:$0xf]
        %v1891 = vld [vmem:[#allocation16 + $0x70] sm:$0xf]
        %v1892 = vld [vmem:[#allocation16 + $0x74] sm:$0xf]
        %v1893 = vld [vmem:[#allocation16 + $0x78] sm:$0xf]
        %v1894 = vld [vmem:[#allocation16 + $0x7c] sm:$0xf]
        %v1895 = vld [vmem:[#allocation16 + $0x80] sm:$0xf]
        %v1896 = vld [vmem:[#allocation16 + $0x84] sm:$0xf]
        %v1897 = vld [vmem:[#allocation16 + $0x88] sm:$0xf]
        %v1898 = vld [vmem:[#allocation16 + $0x8c] sm:$0xf]
        %v1899 = vld [vmem:[#allocation16 + $0x90] sm:$0xf]
        %v1900 = vld [vmem:[#allocation16 + $0x94] sm:$0xf]
        %v1901 = vld [vmem:[#allocation16 + $0x98] sm:$0xf]
        %v1902 = vld [vmem:[#allocation16 + $0x9c] sm:$0xf]
        %v1903 = vld [vmem:[#allocation16 + $0xa0] sm:$0xf]
        %v1904 = vld [vmem:[#allocation16 + $0xa4] sm:$0xf]
        %v1905 = vld [vmem:[#allocation16 + $0xa8] sm:$0xf]
        %v1906 = vld [vmem:[#allocation16 + $0xac] sm:$0xf]
        %v1907 = vld [vmem:[#allocation16 + $0xb0] sm:$0xf]
        %v1908 = vld [vmem:[#allocation16 + $0xb4] sm:$0xf]
        %v1909 = vld [vmem:[#allocation16 + $0xb8] sm:$0xf]
        %v1910 = vld [vmem:[#allocation16 + $0xbc] sm:$0xf]
        %v1911 = vld [vmem:[#allocation16 + $0xc0] sm:$0xf]
        %v1912 = vld [vmem:[#allocation16 + $0xc4] sm:$0xf]
        %v1913 = vld [vmem:[#allocation16 + $0xc8] sm:$0xf]
        %v1914 = vld [vmem:[#allocation16 + $0xcc] sm:$0xf]
        %v1915 = vld [vmem:[#allocation16 + $0xd0] sm:$0xf]
        %v1916 = vld [vmem:[#allocation16 + $0xd4] sm:$0xf]
        %v1917 = vld [vmem:[#allocation16 + $0xd8] sm:$0xf]
        %v1918 = vld [vmem:[#allocation16 + $0xdc] sm:$0xf]
        %v1919 = vld [vmem:[#allocation16 + $0xe0] sm:$0xf]
        %v1920 = vld [vmem:[#allocation16 + $0xe4] sm:$0xf]
        %v1921 = vld [vmem:[#allocation16 + $0xe8] sm:$0xf]
        %v1922 = vld [vmem:[#allocation16 + $0xec] sm:$0xf]
        %v1923 = vld [vmem:[#allocation16 + $0xf0] sm:$0xf]
        %v1924 = vld [vmem:[#allocation16 + $0xf4] sm:$0xf]
        %v1925 = vld [vmem:[#allocation16 + $0xf8] sm:$0xf]
        %v1926 = vld [vmem:[#allocation16 + $0xfc] sm:$0xf]
        %v1927 = vld [vmem:[%s13] sm:$0x1]
        %v1929 = vperm.slane %v1927, 0
        %v1995 = vunpack.c.l.b16 %v1863
        %v1996 = vunpack.c.l.b16 %v1864
        %v1997 = vunpack.c.l.b16 %v1865
        %v1998 = vunpack.c.l.b16 %v1866
        %v1999 = vunpack.c.l.b16 %v1867
        %v2000 = vunpack.c.l.b16 %v1868
        %v2001 = vunpack.c.l.b16 %v1869
        %v2002 = vunpack.c.l.b16 %v1870
        %v2003 = vunpack.c.l.b16 %v1871
        %v2004 = vunpack.c.l.b16 %v1872
        %v2005 = vunpack.c.l.b16 %v1873
        %v2006 = vunpack.c.l.b16 %v1874
        %v2007 = vunpack.c.l.b16 %v1875
        %v2008 = vunpack.c.l.b16 %v1876
        %v2009 = vunpack.c.l.b16 %v1877
        %v2010 = vunpack.c.l.b16 %v1878
        %v2011 = vunpack.c.l.b16 %v1879
        %v2012 = vunpack.c.l.b16 %v1880
        %v2013 = vunpack.c.l.b16 %v1881
        %v2014 = vunpack.c.l.b16 %v1882
        %v2015 = vunpack.c.l.b16 %v1883
        %v2016 = vunpack.c.l.b16 %v1884
        %v2017 = vunpack.c.l.b16 %v1885
        %v2018 = vunpack.c.l.b16 %v1886
        %v2019 = vunpack.c.l.b16 %v1887
        %v2020 = vunpack.c.l.b16 %v1888
        %v2021 = vunpack.c.l.b16 %v1889
        %v2022 = vunpack.c.l.b16 %v1890
        %v2023 = vunpack.c.l.b16 %v1891
        %v2024 = vunpack.c.l.b16 %v1892
        %v2025 = vunpack.c.l.b16 %v1893
        %v2026 = vunpack.c.l.b16 %v1894
        %v2027 = vunpack.c.l.b16 %v1895
        %v2028 = vunpack.c.l.b16 %v1896
        %v2029 = vunpack.c.l.b16 %v1897
        %v2030 = vunpack.c.l.b16 %v1898
        %v2031 = vunpack.c.l.b16 %v1899
        %v2032 = vunpack.c.l.b16 %v1900
        %v2033 = vunpack.c.l.b16 %v1901
        %v2034 = vunpack.c.l.b16 %v1902
        %v2035 = vunpack.c.l.b16 %v1903
        %v2036 = vunpack.c.l.b16 %v1904
        %v2037 = vunpack.c.l.b16 %v1905
        %v2038 = vunpack.c.l.b16 %v1906
        %v2039 = vunpack.c.l.b16 %v1907
        %v2040 = vunpack.c.l.b16 %v1908
        %v2041 = vunpack.c.l.b16 %v1909
        %v2042 = vunpack.c.l.b16 %v1910
        %v2043 = vunpack.c.l.b16 %v1911
        %v2044 = vunpack.c.l.b16 %v1912
        %v2045 = vunpack.c.l.b16 %v1913
        %v2046 = vunpack.c.l.b16 %v1914
        %v2047 = vunpack.c.l.b16 %v1915
        %v2048 = vunpack.c.l.b16 %v1916
        %v2049 = vunpack.c.l.b16 %v1917
        %v2050 = vunpack.c.l.b16 %v1918
        %v2051 = vunpack.c.l.b16 %v1919
        %v2052 = vunpack.c.l.b16 %v1920
        %v2053 = vunpack.c.l.b16 %v1921
        %v2054 = vunpack.c.l.b16 %v1922
        %v2055 = vunpack.c.l.b16 %v1923
        %v2056 = vunpack.c.l.b16 %v1924
        %v2057 = vunpack.c.l.b16 %v1925
        %v2058 = vunpack.c.l.b16 %v1926
        %v2059 = vpack.c.b16 %v1996, %v1995
        %v2060 = vpack.c.b16 %v1998, %v1997
        %v2061 = vpack.c.b16 %v2000, %v1999
        %v2062 = vpack.c.b16 %v2002, %v2001
        %v2063 = vpack.c.b16 %v2004, %v2003
        %v2064 = vpack.c.b16 %v2006, %v2005
        %v2065 = vpack.c.b16 %v2008, %v2007
        %v2066 = vpack.c.b16 %v2010, %v2009
        %v2067 = vpack.c.b16 %v2012, %v2011
        %v2068 = vpack.c.b16 %v2014, %v2013
        %v2069 = vpack.c.b16 %v2016, %v2015
        %v2070 = vpack.c.b16 %v2018, %v2017
        %v2071 = vpack.c.b16 %v2020, %v2019
        %v2072 = vpack.c.b16 %v2022, %v2021
        %v2073 = vpack.c.b16 %v2024, %v2023
        %v2074 = vpack.c.b16 %v2026, %v2025
        %v2075 = vpack.c.b16 %v2028, %v2027
        %v2076 = vpack.c.b16 %v2030, %v2029
        %v2077 = vpack.c.b16 %v2032, %v2031
        %v2078 = vpack.c.b16 %v2034, %v2033
        %v2079 = vpack.c.b16 %v2036, %v2035
        %v2080 = vpack.c.b16 %v2038, %v2037
        %v2081 = vpack.c.b16 %v2040, %v2039
        %v2082 = vpack.c.b16 %v2042, %v2041
        %v2083 = vpack.c.b16 %v2044, %v2043
        %v2084 = vpack.c.b16 %v2046, %v2045
        %v2085 = vpack.c.b16 %v2048, %v2047
        %v2086 = vpack.c.b16 %v2050, %v2049
        %v2087 = vpack.c.b16 %v2052, %v2051
        %v2088 = vpack.c.b16 %v2054, %v2053
        %v2089 = vpack.c.b16 %v2056, %v2055
        %v2090 = vpack.c.b16 %v2058, %v2057
        %2123 = vmatpush.bf16.msra.mxu0 %v2066
        %2124 = vmatpush.bf16.msra.mxu0 %v2065
        %2125 = vmatpush.bf16.msra.mxu0 %v2064
        %2126 = vmatpush.bf16.msra.mxu0 %v2063
        %2127 = vmatpush.bf16.msra.mxu0 %v2062
        %2128 = vmatpush.bf16.msra.mxu0 %v2061
        %2129 = vmatpush.bf16.msra.mxu0 %v2060
        %2130 = vmatpush.bf16.msra.mxu0 %v2059
        %2131 = vmatmul.bf16.gmra.mxu0 %v1859
        %v2132 = vpop.f32.mrf.mxu0
        %v2133 = vadd.f32 %v1929, %v2132
        %v2134 = vpop.f32.mrf.mxu0
        %v2135 = vadd.f32 %v1929, %v2134
        %2136 = vdwg.mxu0
        %2137 = vmatpush.bf16.msra.mxu0 %v2074
        %2138 = vmatpush.bf16.msra.mxu0 %v2073
        %2139 = vmatpush.bf16.msra.mxu0 %v2072
        %2140 = vmatpush.bf16.msra.mxu0 %v2071
        %2141 = vmatpush.bf16.msra.mxu0 %v2070
        %2142 = vmatpush.bf16.msra.mxu0 %v2069
        %2143 = vmatpush.bf16.msra.mxu0 %v2068
        %2144 = vmatpush.bf16.msra.mxu0 %v2067
        %2145 = vmatmul.bf16.gmra.mxu0 %v1860
        %v2146 = vpop.f32.mrf.mxu0
        %v2147 = vadd.f32 %v2133, %v2146
        %v2148 = vpop.f32.mrf.mxu0
        %v2149 = vadd.f32 %v2135, %v2148
        %2150 = vdwg.mxu0
        %2151 = vmatpush.bf16.msra.mxu0 %v2082
        %2152 = vmatpush.bf16.msra.mxu0 %v2081
        %2153 = vmatpush.bf16.msra.mxu0 %v2080
        %2154 = vmatpush.bf16.msra.mxu0 %v2079
        %2155 = vmatpush.bf16.msra.mxu0 %v2078
        %2156 = vmatpush.bf16.msra.mxu0 %v2077
        %2157 = vmatpush.bf16.msra.mxu0 %v2076
        %2158 = vmatpush.bf16.msra.mxu0 %v2075
        %2159 = vmatmul.bf16.gmra.mxu0 %v1861
        %v2160 = vpop.f32.mrf.mxu0
        %v2161 = vadd.f32 %v2147, %v2160
        %v2162 = vpop.f32.mrf.mxu0
        %v2163 = vadd.f32 %v2149, %v2162
        %2164 = vdwg.mxu0
        %2165 = vmatpush.bf16.msra.mxu0 %v2090
        %2166 = vmatpush.bf16.msra.mxu0 %v2089
        %2167 = vmatpush.bf16.msra.mxu0 %v2088
        %2168 = vmatpush.bf16.msra.mxu0 %v2087
        %2169 = vmatpush.bf16.msra.mxu0 %v2086
        %2170 = vmatpush.bf16.msra.mxu0 %v2085
        %2171 = vmatpush.bf16.msra.mxu0 %v2084
        %2172 = vmatpush.bf16.msra.mxu0 %v2083
        %2173 = vmatmul.bf16.gmra.mxu0 %v1862
        %v2174 = vpop.f32.mrf.mxu0
        %v2175 = vadd.f32 %v2161, %v2174
        %v2176 = vpop.f32.mrf.mxu0
        %v2177 = vadd.f32 %v2163, %v2176
        %2178 = vdwg.mxu0
        %v2179 = vadd.f32 %v1467, %v2175
        %v2180 = vadd.f32 %v1468, %v2177
        %2181 = vst [vmem:[%s644] sm:$0xff] %v2179
        %2182 = vst [vmem:[%s644 + $0x8] sm:$0xff] %v2180
        %s2183 = sand.u32 %s365, 1
        %s2184 = scalar_lea.sflag [#allocation6], %s2183
        %s2185 = sand.u32 %s365, 1
        %s2186 = smul.addr %s2185, 16
        %s2187 = scalar_lea.vmem [#allocation18], %s2186
        // Predicated region
        $region113: #{tpu_custom_call.1} parent=75 // pred_check
          %p2188 = pneg %p375
        $region114: #{tpu_custom_call.1} parent=75 // pred_check_branch
          %2190 = sbr.rel (%p2188) target = $region116
        $region115: #{tpu_custom_call.1} parent=75 // pred_region
          %s2191 = smul.u32 2, %s42
          %2193 = vsyncadd %s2184, 0
          %s2194 = smul.addr %s41, 2
          %s2195 = sadd.s32 %s2191, %s2194
          %s2196 = smul.addr %s2195, 8
          %s2197 = scalar_lea.hbm %s14, %s2196
          %s2198 = sshll.u32 %s2187, 4
          %s2199 = int_to_ptr.vmem [resolvable:$true] %s2198
          %s2200 = sshll.u32 %s2197, 4
          %s2201 = int_to_ptr.hbm [resolvable:$true] %s2200
          %2206 = dma.vmem_to_hbm [thread:$0]  %s2199, 256, %s2201, %s2184, 128, 128, 8
        $region116: #{tpu_custom_call.1} parent=75 // pred_fallthru
          _
      $region76: #{tpu_custom_call.1} parent=5 // pred_fallthru
        _
      %p2207 = scmp.le.s32.totalorder 2, %s32
      // Predicated region
      $region117: #{tpu_custom_call.1} parent=5 // pred_check
        %p2208 = pneg %p2207
      $region118: #{tpu_custom_call.1} parent=5 // pred_check_branch
        %2210 = sbr.rel (%p2208) target = $region120
      $region119: #{tpu_custom_call.1} parent=5 // pred_region
        %s2211 = ssub.s32 %s32, 2
        // Predicated region
        $region121: #{tpu_custom_call.1} parent=119 // pred_check
          %p2212 = pneg %p381
        $region122: #{tpu_custom_call.1} parent=119 // pred_check_branch
          %2214 = sbr.rel (%p2212) target = $region124
        $region123: #{tpu_custom_call.1} parent=119 // pred_region
          %s2215 = sand.u32 %s366, 1
          %s2216 = scalar_lea.sflag [#allocation6], %s2215
          %s2217 = sand.u32 %s366, 1
          %s2218 = smul.addr %s2217, 16
          %s2219 = scalar_lea.vmem [#allocation18], %s2218
          %2221 = dma.done %s2216, 256
        $region124: #{tpu_custom_call.1} parent=119 // pred_fallthru
          _
      $region120: #{tpu_custom_call.1} parent=5 // pred_fallthru
        _
    $region6: #{tpu_custom_call.1} parent=1 // loop_footer
      %s36 = sadd.s32 1, %s32
    $region7: #{tpu_custom_call.1} parent=1 // loop_footer_branch
      %31 = sbr.rel target = $region3
    $region8: #{tpu_custom_call.1} parent=1 // loop_exit
      _
    %2222 = vsyncpa [#allocation5], 1
    %s2223 = scalar_lea.sflag [#allocation5], 1
    %2224 = vsyncpa %s2223, 1
    %2225 = vsyncpa [#allocation8], 1
    %s2226 = scalar_lea.sflag [#allocation8], 1
    %2227 = vsyncpa %s2226, 1
    %2228 = vsyncpa [#allocation11], 1
    %2229 = vsyncpa [#allocation14], 1
    %2230 = vsyncpa [#allocation17], 1
    %2231 = vsyncpa [#allocation6], 1
    %s2232 = scalar_lea.sflag [#allocation6], 1
    %2233 = vsyncpa %s2232, 1

</llo_original>
